<compile_context>
chip_gen: v7x
topology: tpu7x:2x2x1
jax: 0.10.0
libtpu: 0.0.40
codegen_flags: <defaults>
</compile_context>

<pallas_src>
import jax
import jax.numpy as jnp
from jax.experimental import pallas as pl
from jax.experimental.pallas import tpu as pltpu

# ---- model hyper-parameters (PyTorch defaults) -----------------------------
DIM_IN = 2
DIM_OUT = 1
NUM_RESNET_BLOCKS = 2
NUM_LAYERS_PER_BLOCK = 2
NUM_NEURONS = 50
NP = 64                                   # padded neuron width (multiple of 8)
NBL = NUM_RESNET_BLOCKS * NUM_LAYERS_PER_BLOCK

# TODO(synk): fourier_features=True branch (cos/sin feature map) not
# implemented; the module's default (fourier_features=False) path is covered.


# ---- kernel ----------------------------------------------------------------
def dense_resnet_kernel(
    xT_ref,    # VMEM (DIM_IN, TB)        -- input, batch on lanes
    wf_ref,    # VMEM (NP, DIM_IN)        -- first.weight (beta0 folded, padded)
    bf_ref,    # VMEM (NP, 1)             -- first.bias   (beta0 folded, padded)
    wb_ref,    # VMEM (NBL, NP, NP)       -- resblock weights (beta folded)
    bb_ref,    # VMEM (NBL, NP, 1)        -- resblock biases  (beta folded)
    wl_ref,    # VMEM (DIM_OUT, NP)       -- last.weight (padded)
    bl_ref,    # VMEM (DIM_OUT, 1)        -- last.bias
    outT_ref,  # VMEM (DIM_OUT, TB)       -- output, batch on lanes
):
    xT = xT_ref[...].astype(jnp.float32)

    # h^T = sigmoid(beta0 * (Wf x + bf))    (beta0 pre-folded into Wf, bf)
    h = jax.nn.sigmoid(
        jnp.dot(wf_ref[...], xT, preferred_element_type=jnp.float32) + bf_ref[...])

    # ResNet blocks (statically unrolled — tiny trip counts)
    for i in range(NUM_RESNET_BLOCKS):
        k = i * NUM_LAYERS_PER_BLOCK
        z = jax.nn.sigmoid(
            jnp.dot(wb_ref[k], h, preferred_element_type=jnp.float32) + bb_ref[k])
        for j in range(1, NUM_LAYERS_PER_BLOCK):
            k = i * NUM_LAYERS_PER_BLOCK + j
            z = jax.nn.sigmoid(
                jnp.dot(wb_ref[k], z, preferred_element_type=jnp.float32) + bb_ref[k])
        h = z + h

    # out^T = Wl h^T + bl   -> lane-dense (DIM_OUT, TB) store
    out = jnp.dot(wl_ref[...], h, preferred_element_type=jnp.float32) + bl_ref[...]
    outT_ref[...] = out.astype(outT_ref.dtype)


# ---- parameter packing (pad to NP, fold betas, keep PyTorch [out,in]) ------
def pack_params(params):
    beta0 = params["beta0"][0, 0]
    beta = params["beta"]

    wf = jnp.zeros((NP, DIM_IN), jnp.float32).at[:NUM_NEURONS, :].set(
        params["first_w"]) * beta0
    bf = jnp.zeros((NP, 1), jnp.float32).at[:NUM_NEURONS, 0].set(
        params["first_b"]) * beta0

    wb_list, bb_list = [], []
    for i in range(NUM_RESNET_BLOCKS):
        for j in range(NUM_LAYERS_PER_BLOCK):
            w = jnp.zeros((NP, NP), jnp.float32).at[:NUM_NEURONS, :NUM_NEURONS].set(
                params["res_w"][i][j]) * beta[i, j]
            b = jnp.zeros((NP, 1), jnp.float32).at[:NUM_NEURONS, 0].set(
                params["res_b"][i][j]) * beta[i, j]
            wb_list.append(w)
            bb_list.append(b)
    wb = jnp.stack(wb_list, axis=0)          # (NBL, NP, NP)
    bb = jnp.stack(bb_list, axis=0)          # (NBL, NP, 1)

    wl = jnp.zeros((DIM_OUT, NP), jnp.float32).at[:, :NUM_NEURONS].set(
        params["last_w"])
    bl = params["last_b"].reshape(DIM_OUT, 1).astype(jnp.float32)

    return wf, bf, wb, bb, wl, bl


# ---- wrapper ---------------------------------------------------------------
def dense_resnet_forward(x, params, *, tile_batch=512):
    """x: [N, DIM_IN] float32.  Returns [N, DIM_OUT] float32."""
    assert tile_batch % 128 == 0, "tile_batch must be a multiple of 128 (lane axis)"
    n = x.shape[0]
    n_pad = ((n + tile_batch - 1) // tile_batch) * tile_batch

    # batch on the lane axis; zero-pad ragged tail (padded columns are sliced off)
    x_t = jnp.zeros((DIM_IN, n_pad), jnp.float32).at[:, :n].set(x.T)

    wf, bf, wb, bb, wl, bl = pack_params(params)
    grid = (n_pad // tile_batch,)

    out_t = pl.pallas_call(
        dense_resnet_kernel,
        out_shape=jax.ShapeDtypeStruct((DIM_OUT, n_pad), jnp.float32),
        grid=grid,
        in_specs=[
            # streaming input: batch tile on lanes
            pl.BlockSpec((DIM_IN, tile_batch), lambda i: (0, i)),
            # parameters: full arrays, resident across the grid
            pl.BlockSpec((NP, DIM_IN), lambda i: (0, 0)),
            pl.BlockSpec((NP, 1), lambda i: (0, 0)),
            pl.BlockSpec((NBL, NP, NP), lambda i: (0, 0, 0)),
            pl.BlockSpec((NBL, NP, 1), lambda i: (0, 0, 0)),
            pl.BlockSpec((DIM_OUT, NP), lambda i: (0, 0)),
            pl.BlockSpec((DIM_OUT, 1), lambda i: (0, 0)),
        ],
        out_specs=pl.BlockSpec((DIM_OUT, tile_batch), lambda i: (0, i)),
        compiler_params=pltpu.CompilerParams(
            dimension_semantics=("parallel",)),
    )(x_t, wf, bf, wb, bb, wl, bl)

    return out_t.T[:n]


# ---- pure-JAX reference (for verification) ---------------------------------
def dense_resnet_reference(x, params):
    beta0 = params["beta0"][0, 0]
    beta = params["beta"]
    h = jax.nn.sigmoid(beta0 * (x @ params["first_w"].T + params["first_b"]))
    for i in range(NUM_RESNET_BLOCKS):
        z = jax.nn.sigmoid(
            beta[i, 0] * (h @ params["res_w"][i][0].T + params["res_b"][i][0]))
        for j in range(1, NUM_LAYERS_PER_BLOCK):
            z = jax.nn.sigmoid(
                beta[i, j] * (z @ params["res_w"][i][j].T + params["res_b"][i][j]))
        h = z + h
    return h @ params["last_w"].T + params["last_b"]


# ---- deterministic parameter init ------------------------------------------
def init_params(key):
    keys = jax.random.split(key, 3 + NUM_RESNET_BLOCKS * NUM_LAYERS_PER_BLOCK)
    kidx = 0

    def linear_init(k, fan_in, fan_out):
        # mimic PyTorch nn.Linear default: U(-1/sqrt(fan_in), 1/sqrt(fan_in))
        kw, kb = jax.random.split(k)
        bound = 1.0 / jnp.sqrt(fan_in)
        w = jax.random.uniform(kw, (fan_out, fan_in), jnp.float32, -bound, bound)
        b = jax.random.uniform(kb, (fan_out,), jnp.float32, -bound, bound)
        return w, b

    first_w, first_b = linear_init(keys[kidx], DIM_IN, NUM_NEURONS); kidx += 1
    res_w, res_b = [], []
    for _ in range(NUM_RESNET_BLOCKS):
        ws, bs = [], []
        for _ in range(NUM_LAYERS_PER_BLOCK):
            w, b = linear_init(keys[kidx], NUM_NEURONS, NUM_NEURONS); kidx += 1
            ws.append(w); bs.append(b)
        res_w.append(ws); res_b.append(bs)
    last_w, last_b = linear_init(keys[kidx], NUM_NEURONS, DIM_OUT); kidx += 1

    return {
        "beta0": jnp.ones((1, 1), jnp.float32),   # tune_beta=False -> fixed 1
        "beta": jnp.ones((NUM_RESNET_BLOCKS, NUM_LAYERS_PER_BLOCK), jnp.float32),
        "first_w": first_w, "first_b": first_b,
        "res_w": res_w, "res_b": res_b,
        "last_w": last_w, "last_b": last_b,
    }


if __name__ == "__main__":
    key = jax.random.PRNGKey(0)
    pkey, xkey = jax.random.split(key)
    params = init_params(pkey)

    # ragged batch to exercise padding; n_pad=1024 -> grid=(2,) so both
    # v7x TensorCores get a tile
    N = 1000
    x = jax.random.normal(xkey, (N, DIM_IN), jnp.float32)

    out = dense_resnet_forward(x, params, tile_batch=512)
    out = jax.block_until_ready(out)

    ref = dense_resnet_reference(x, params)
    assert out.shape == (N, DIM_OUT)
    assert jnp.allclose(out, ref, atol=1e-5, rtol=1e-5), "mismatch vs reference"

    print("KERNEL_OK")
</pallas_src>

<mosaic_0001>
module attributes {stable_mosaic.version = 11 : i64} {
  func.func @dense_resnet_kernel(%arg0: i32, %arg1: memref<2x512xf32, #tpu.memory_space<vmem>>, %arg2: memref<64x2xf32, #tpu.memory_space<vmem>>, %arg3: memref<64x1xf32, #tpu.memory_space<vmem>>, %arg4: memref<4x64x64xf32, #tpu.memory_space<vmem>>, %arg5: memref<4x64x1xf32, #tpu.memory_space<vmem>>, %arg6: memref<1x64xf32, #tpu.memory_space<vmem>>, %arg7: memref<1x1xf32, #tpu.memory_space<vmem>>, %arg8: memref<1x512xf32, #tpu.memory_space<vmem>>) attributes {dimension_semantics = [#tpu.dimension_semantics<parallel>], iteration_bounds = array<i64: 2>, scalar_prefetch = 0 : i64, scratch_operands = 0 : i64, tpu.core_type = #tpu.core_type<tc>, window_params = [{transform_indices = @transform_0, window_bounds = array<i64: 2, 512>}, {pipeline_mode = #tpu.pipeline_mode<synchronous>, transform_indices = @transform_1, window_bounds = array<i64: 64, 2>}, {pipeline_mode = #tpu.pipeline_mode<synchronous>, transform_indices = @transform_2, window_bounds = array<i64: 64, 1>}, {pipeline_mode = #tpu.pipeline_mode<synchronous>, transform_indices = @transform_3, window_bounds = array<i64: 4, 64, 64>}, {pipeline_mode = #tpu.pipeline_mode<synchronous>, transform_indices = @transform_4, window_bounds = array<i64: 4, 64, 1>}, {pipeline_mode = #tpu.pipeline_mode<synchronous>, transform_indices = @transform_5, window_bounds = array<i64: 1, 64>}, {pipeline_mode = #tpu.pipeline_mode<synchronous>, transform_indices = @transform_6, window_bounds = array<i64: 1, 1>}, {transform_indices = @transform_7, window_bounds = array<i64: 1, 512>}]} {
    %c0 = arith.constant 0 : index
    %c0_0 = arith.constant 0 : index
    %0 = vector.load %arg1[%c0, %c0_0] : memref<2x512xf32, #tpu.memory_space<vmem>>, vector<2x512xf32>
    %c0_1 = arith.constant 0 : index
    %c0_2 = arith.constant 0 : index
    %1 = vector.load %arg2[%c0_1, %c0_2] : memref<64x2xf32, #tpu.memory_space<vmem>>, vector<64x2xf32>
    %cst = arith.constant dense<0.000000e+00> : vector<64x512xf32>
    %2 = tpu.matmul %1, %0, %cst {dimension_numbers = #tpu.dot_dimension_numbers<[1], [0], [0], [1], [0, 0, 1, 1], [], []>} : vector<64x2xf32>, vector<2x512xf32>, vector<64x512xf32> -> vector<64x512xf32>
    %c0_3 = arith.constant 0 : index
    %c0_4 = arith.constant 0 : index
    %3 = vector.load %arg3[%c0_3, %c0_4] : memref<64x1xf32, #tpu.memory_space<vmem>>, vector<64x1xf32>
    %4 = vector.broadcast %3 : vector<64x1xf32> to vector<64x512xf32>
    %5 = arith.addf %2, %4 : vector<64x512xf32>
    %6 = arith.negf %5 : vector<64x512xf32>
    %7 = math.exp %6 : vector<64x512xf32>
    %cst_5 = arith.constant 1.000000e+00 : f32
    %8 = vector.broadcast %cst_5 : f32 to vector<64x512xf32>
    %9 = arith.addf %8, %7 : vector<64x512xf32>
    %10 = arith.divf %8, %9 : vector<64x512xf32>
    %c0_6 = arith.constant 0 : index
    %c0_7 = arith.constant 0 : index
    %c0_8 = arith.constant 0 : index
    %11 = vector.load %arg4[%c0_6, %c0_7, %c0_8] : memref<4x64x64xf32, #tpu.memory_space<vmem>>, vector<1x64x64xf32>
    %12 = vector.shape_cast %11 : vector<1x64x64xf32> to vector<64x64xf32>
    %cst_9 = arith.constant dense<0.000000e+00> : vector<64x512xf32>
    %13 = tpu.matmul %12, %10, %cst_9 {dimension_numbers = #tpu.dot_dimension_numbers<[1], [0], [0], [1], [0, 0, 1, 1], [], []>} : vector<64x64xf32>, vector<64x512xf32>, vector<64x512xf32> -> vector<64x512xf32>
    %c0_10 = arith.constant 0 : index
    %c0_11 = arith.constant 0 : index
    %c0_12 = arith.constant 0 : index
    %14 = vector.load %arg5[%c0_10, %c0_11, %c0_12] : memref<4x64x1xf32, #tpu.memory_space<vmem>>, vector<1x64x1xf32>
    %15 = vector.shape_cast %14 : vector<1x64x1xf32> to vector<64x1xf32>
    %16 = vector.broadcast %15 : vector<64x1xf32> to vector<64x512xf32>
    %17 = arith.addf %13, %16 : vector<64x512xf32>
    %18 = arith.negf %17 : vector<64x512xf32>
    %19 = math.exp %18 : vector<64x512xf32>
    %cst_13 = arith.constant 1.000000e+00 : f32
    %20 = vector.broadcast %cst_13 : f32 to vector<64x512xf32>
    %21 = arith.addf %20, %19 : vector<64x512xf32>
    %22 = arith.divf %20, %21 : vector<64x512xf32>
    %c1 = arith.constant 1 : index
    %c0_14 = arith.constant 0 : index
    %c0_15 = arith.constant 0 : index
    %23 = vector.load %arg4[%c1, %c0_14, %c0_15] : memref<4x64x64xf32, #tpu.memory_space<vmem>>, vector<1x64x64xf32>
    %24 = vector.shape_cast %23 : vector<1x64x64xf32> to vector<64x64xf32>
    %cst_16 = arith.constant dense<0.000000e+00> : vector<64x512xf32>
    %25 = tpu.matmul %24, %22, %cst_16 {dimension_numbers = #tpu.dot_dimension_numbers<[1], [0], [0], [1], [0, 0, 1, 1], [], []>} : vector<64x64xf32>, vector<64x512xf32>, vector<64x512xf32> -> vector<64x512xf32>
    %c1_17 = arith.constant 1 : index
    %c0_18 = arith.constant 0 : index
    %c0_19 = arith.constant 0 : index
    %26 = vector.load %arg5[%c1_17, %c0_18, %c0_19] : memref<4x64x1xf32, #tpu.memory_space<vmem>>, vector<1x64x1xf32>
    %27 = vector.shape_cast %26 : vector<1x64x1xf32> to vector<64x1xf32>
    %28 = vector.broadcast %27 : vector<64x1xf32> to vector<64x512xf32>
    %29 = arith.addf %25, %28 : vector<64x512xf32>
    %30 = arith.negf %29 : vector<64x512xf32>
    %31 = math.exp %30 : vector<64x512xf32>
    %cst_20 = arith.constant 1.000000e+00 : f32
    %32 = vector.broadcast %cst_20 : f32 to vector<64x512xf32>
    %33 = arith.addf %32, %31 : vector<64x512xf32>
    %34 = arith.divf %32, %33 : vector<64x512xf32>
    %35 = arith.addf %34, %10 : vector<64x512xf32>
    %c2 = arith.constant 2 : index
    %c0_21 = arith.constant 0 : index
    %c0_22 = arith.constant 0 : index
    %36 = vector.load %arg4[%c2, %c0_21, %c0_22] : memref<4x64x64xf32, #tpu.memory_space<vmem>>, vector<1x64x64xf32>
    %37 = vector.shape_cast %36 : vector<1x64x64xf32> to vector<64x64xf32>
    %cst_23 = arith.constant dense<0.000000e+00> : vector<64x512xf32>
    %38 = tpu.matmul %37, %35, %cst_23 {dimension_numbers = #tpu.dot_dimension_numbers<[1], [0], [0], [1], [0, 0, 1, 1], [], []>} : vector<64x64xf32>, vector<64x512xf32>, vector<64x512xf32> -> vector<64x512xf32>
    %c2_24 = arith.constant 2 : index
    %c0_25 = arith.constant 0 : index
    %c0_26 = arith.constant 0 : index
    %39 = vector.load %arg5[%c2_24, %c0_25, %c0_26] : memref<4x64x1xf32, #tpu.memory_space<vmem>>, vector<1x64x1xf32>
    %40 = vector.shape_cast %39 : vector<1x64x1xf32> to vector<64x1xf32>
    %41 = vector.broadcast %40 : vector<64x1xf32> to vector<64x512xf32>
    %42 = arith.addf %38, %41 : vector<64x512xf32>
    %43 = arith.negf %42 : vector<64x512xf32>
    %44 = math.exp %43 : vector<64x512xf32>
    %cst_27 = arith.constant 1.000000e+00 : f32
    %45 = vector.broadcast %cst_27 : f32 to vector<64x512xf32>
    %46 = arith.addf %45, %44 : vector<64x512xf32>
    %47 = arith.divf %45, %46 : vector<64x512xf32>
    %c3 = arith.constant 3 : index
    %c0_28 = arith.constant 0 : index
    %c0_29 = arith.constant 0 : index
    %48 = vector.load %arg4[%c3, %c0_28, %c0_29] : memref<4x64x64xf32, #tpu.memory_space<vmem>>, vector<1x64x64xf32>
    %49 = vector.shape_cast %48 : vector<1x64x64xf32> to vector<64x64xf32>
    %cst_30 = arith.constant dense<0.000000e+00> : vector<64x512xf32>
    %50 = tpu.matmul %49, %47, %cst_30 {dimension_numbers = #tpu.dot_dimension_numbers<[1], [0], [0], [1], [0, 0, 1, 1], [], []>} : vector<64x64xf32>, vector<64x512xf32>, vector<64x512xf32> -> vector<64x512xf32>
    %c3_31 = arith.constant 3 : index
    %c0_32 = arith.constant 0 : index
    %c0_33 = arith.constant 0 : index
    %51 = vector.load %arg5[%c3_31, %c0_32, %c0_33] : memref<4x64x1xf32, #tpu.memory_space<vmem>>, vector<1x64x1xf32>
    %52 = vector.shape_cast %51 : vector<1x64x1xf32> to vector<64x1xf32>
    %53 = vector.broadcast %52 : vector<64x1xf32> to vector<64x512xf32>
    %54 = arith.addf %50, %53 : vector<64x512xf32>
    %55 = arith.negf %54 : vector<64x512xf32>
    %56 = math.exp %55 : vector<64x512xf32>
    %cst_34 = arith.constant 1.000000e+00 : f32
    %57 = vector.broadcast %cst_34 : f32 to vector<64x512xf32>
    %58 = arith.addf %57, %56 : vector<64x512xf32>
    %59 = arith.divf %57, %58 : vector<64x512xf32>
    %60 = arith.addf %59, %35 : vector<64x512xf32>
    %c0_35 = arith.constant 0 : index
    %c0_36 = arith.constant 0 : index
    %61 = vector.load %arg6[%c0_35, %c0_36] : memref<1x64xf32, #tpu.memory_space<vmem>>, vector<1x64xf32>
    %cst_37 = arith.constant dense<0.000000e+00> : vector<1x512xf32>
    %62 = tpu.matmul %61, %60, %cst_37 {dimension_numbers = #tpu.dot_dimension_numbers<[1], [0], [0], [1], [0, 0, 1, 1], [], []>} : vector<1x64xf32>, vector<64x512xf32>, vector<1x512xf32> -> vector<1x512xf32>
    %c0_38 = arith.constant 0 : index
    %c0_39 = arith.constant 0 : index
    %63 = vector.load %arg7[%c0_38, %c0_39] : memref<1x1xf32, #tpu.memory_space<vmem>>, vector<1x1xf32>
    %64 = vector.broadcast %63 : vector<1x1xf32> to vector<1x512xf32>
    %65 = arith.addf %62, %64 : vector<1x512xf32>
    %c0_40 = arith.constant 0 : index
    %c0_41 = arith.constant 0 : index
    %66 = vector.load %arg8[%c0_40, %c0_41] : memref<1x512xf32, #tpu.memory_space<vmem>>, vector<1x512xf32>
    tpu.vector_store %arg8[%c0_40, %c0_41], %65 {strides = array<i32>} : memref<1x512xf32, #tpu.memory_space<vmem>>, vector<1x512xf32>,
    return
  }
  func.func @transform_0(%arg0: i32) -> (i32, i32) {
    %c0_i32 = arith.constant 0 : i32
    %c0_i32_0 = arith.constant 0 : i32
    return %c0_i32, %arg0 : i32, i32
  }
  func.func @transform_1(%arg0: i32) -> (i32, i32) {
    %c0_i32 = arith.constant 0 : i32
    %c0_i32_0 = arith.constant 0 : i32
    %c0_i32_1 = arith.constant 0 : i32
    return %c0_i32, %c0_i32_0 : i32, i32
  }
  func.func @transform_2(%arg0: i32) -> (i32, i32) {
    %c0_i32 = arith.constant 0 : i32
    %c0_i32_0 = arith.constant 0 : i32
    %c0_i32_1 = arith.constant 0 : i32
    return %c0_i32, %c0_i32_0 : i32, i32
  }
  func.func @transform_3(%arg0: i32) -> (i32, i32, i32) {
    %c0_i32 = arith.constant 0 : i32
    %c0_i32_0 = arith.constant 0 : i32
    %c0_i32_1 = arith.constant 0 : i32
    %c0_i32_2 = arith.constant 0 : i32
    return %c0_i32, %c0_i32_0, %c0_i32_1 : i32, i32, i32
  }
  func.func @transform_4(%arg0: i32) -> (i32, i32, i32) {
    %c0_i32 = arith.constant 0 : i32
    %c0_i32_0 = arith.constant 0 : i32
    %c0_i32_1 = arith.constant 0 : i32
    %c0_i32_2 = arith.constant 0 : i32
    return %c0_i32, %c0_i32_0, %c0_i32_1 : i32, i32, i32
  }
  func.func @transform_5(%arg0: i32) -> (i32, i32) {
    %c0_i32 = arith.constant 0 : i32
    %c0_i32_0 = arith.constant 0 : i32
    %c0_i32_1 = arith.constant 0 : i32
    return %c0_i32, %c0_i32_0 : i32, i32
  }
  func.func @transform_6(%arg0: i32) -> (i32, i32) {
    %c0_i32 = arith.constant 0 : i32
    %c0_i32_0 = arith.constant 0 : i32
    %c0_i32_1 = arith.constant 0 : i32
    return %c0_i32, %c0_i32_0 : i32, i32
  }
  func.func @transform_7(%arg0: i32) -> (i32, i32) {
    %c0_i32 = arith.constant 0 : i32
    %c0_i32_0 = arith.constant 0 : i32
    return %c0_i32, %arg0 : i32, i32
  }
}

</mosaic_0001>

<llo_original>
// kernel: tpu_custom_call.1
$region0: #{tpu_custom_call.1}
  #allocation0 [shape = 'u32[]', space=smem, size = 0x4, offset = 0x4, fixed_abs, tag = 'smem constant byte address 0x4 - core index']
  #allocation1 [shape = 'u32[144,128]{1,0:T(1,128)}', space=vmem, size = 0x12000, scoped, tag = 'internal scratch']
  #allocation2 [shape = 'f32[1,1]{1,0:T(1,128)S(1)}', space=vmem, size = 0x200, scoped, tag = 'scoped memory for tpu_custom_call.1']
  %s0 = inlined_call_operand.vmem [shape: f32[2,1024], index: 0, kind: input, shape index: {}]
  %s1 = inlined_call_operand.vmem [shape: f32[64,2], index: 1, kind: input, shape index: {}]
  %s2 = inlined_call_operand.vmem [shape: f32[64,1], index: 2, kind: input, shape index: {}]
  %s3 = inlined_call_operand.vmem [shape: f32[4,64,64], index: 3, kind: input, shape index: {}]
  %s4 = inlined_call_operand.vmem [shape: f32[4,64,1], index: 4, kind: input, shape index: {}]
  %s5 = inlined_call_operand.vmem [shape: f32[1,64], index: 5, kind: input, shape index: {}]
  %s6 = inlined_call_operand.<no memory space> [shape: f32[1,1], index: 6, kind: input, shape index: {}]
  %s7 = inlined_call_operand.hbm [shape: f32[1,1024], index: 7, kind: output, shape index: {}]
  %s8 = sld [smem:[#allocation0]]
  $region61: #{tpu_custom_call.1} parent=0
    _
  %s10 = ssub.s32 1, %s8
  %s11 = scalar_select 0, %s10, %s8
  %v12 = vstv %s6
  %13 = vst [vmem:[#allocation2] sm:$0x1] %v12
  $region1: #{tpu_custom_call.1} parent=0
    #allocation3 [shape = 'u8[4096]{0}', space=vmem, size = 0x1000, scoped, tag = 'output window, operand 0']
    #allocation4 [shape = 's32[2]{0}', space=sflag, size = 0x8, scoped, tag = 'scoped memory for tpu_custom_call.1']
    %14 = vsyncpa [#allocation4], 0
    %s15 = scalar_lea.sflag [#allocation4], 1
    %16 = vsyncpa %s15, 0
    loop: start=0, step=1, limit=4
    $region2: #{tpu_custom_call.1} parent=1 // loop_pre_header
      _
    $region3: #{tpu_custom_call.1} parent=1 // loop_header
      %s18 = sphi 0, %s22
      %p19 = scmp.ge.s32.totalorder %s18, 4
      %s28 = sphi 0, %s30
      %s31 = sphi 0, %s28
      %s32 = sphi 0, %s31
      %s48 = sphi 0, %s32
      %s52 = sphi 0, %s52
      %s54 = sphi 0, %s52
      %s55 = sphi 0, %s54
      %s69 = sphi 0, %s55
      %s73 = sphi 0, %s73
      %s75 = sphi 0, %s73
      %s76 = sphi 0, %s75
      %s90 = sphi 0, %s76
      %s94 = sphi 0, %s94
      %s96 = sphi 0, %s94
      %s97 = sphi 0, %s96
      %s111 = sphi 0, %s97
      %s115 = sphi 0, %s115
      %s117 = sphi 0, %s115
      %s118 = sphi 0, %s117
      %s132 = sphi 0, %s118
      %s136 = sphi 0, %s136
      %s138 = sphi 0, %s136
      %s139 = sphi 0, %s138
      %s153 = sphi 0, %s139
      %s157 = sphi 0, %s157
      %s159 = sphi 0, %s157
      %s160 = sphi 0, %s159
      %s174 = sphi 0, %s160
      %s180 = sphi 0, %s182
      %s183 = sphi 0, %s180
      %s184 = sphi 0, %s183
      %s200 = sphi 0, %s184
    $region4: #{tpu_custom_call.1} parent=1 // loop_header_branch
      %21 = sbr.rel (%p19) target = $region8
    $region5: #{tpu_custom_call.1} parent=1 // loop_body
      %s23 = ssub.s32 %s18, 1
      %s24 = ssub.s32 %s18, 2
      %s25 = sadd.s32 %s18, 1
      %s26 = ssub.s32 %s18, %s25
      %p27 = scmp.eq.s32.totalorder %s26, 0
      %s29 = sadd.s32 %s28, 1
      %s30 = scalar_select %p27, %s28, %s29
      %p33 = pneg %p27
      %p34 = scmp.eq.s32.totalorder %s18, 1
      %p35 = por %p33, %p34
      %p36 = scmp.ne.s32.totalorder %s28, %s31
      %p37 = scmp.eq.s32.totalorder %s18, 0
      %p38 = por %p36, %p37
      %p39 = scmp.ne.s32.totalorder %s28, %s31
      %p40 = scmp.eq.s32.totalorder %s23, 1
      %p41 = por %p39, %p40
      %p42 = scmp.ne.s32.totalorder %s31, %s32
      %p43 = scmp.eq.s32.totalorder %s23, 0
      %p44 = por %p42, %p43
      %p45 = scmp.ne.s32.totalorder %s31, %s32
      %p46 = scmp.eq.s32.totalorder %s24, 1
      %p47 = por %p45, %p46
      %p49 = scmp.ne.s32.totalorder %s32, %s48
      %p50 = scmp.eq.s32.totalorder %s24, 0
      %p51 = por %p49, %p50
      %s53 = sadd.s32 %s52, 1
      %p56 = scmp.eq.s32.totalorder %s18, 1
      %p57 = scmp.ne.s32.totalorder %s52, %s54
      %p58 = scmp.eq.s32.totalorder %s18, 0
      %p59 = por %p57, %p58
      %p60 = scmp.ne.s32.totalorder %s52, %s54
      %p61 = scmp.eq.s32.totalorder %s23, 1
      %p62 = por %p60, %p61
      %p63 = scmp.ne.s32.totalorder %s54, %s55
      %p64 = scmp.eq.s32.totalorder %s23, 0
      %p65 = por %p63, %p64
      %p66 = scmp.ne.s32.totalorder %s54, %s55
      %p67 = scmp.eq.s32.totalorder %s24, 1
      %p68 = por %p66, %p67
      %p70 = scmp.ne.s32.totalorder %s55, %s69
      %p71 = scmp.eq.s32.totalorder %s24, 0
      %p72 = por %p70, %p71
      %s74 = sadd.s32 %s73, 1
      %p77 = scmp.eq.s32.totalorder %s18, 1
      %p78 = scmp.ne.s32.totalorder %s73, %s75
      %p79 = scmp.eq.s32.totalorder %s18, 0
      %p80 = por %p78, %p79
      %p81 = scmp.ne.s32.totalorder %s73, %s75
      %p82 = scmp.eq.s32.totalorder %s23, 1
      %p83 = por %p81, %p82
      %p84 = scmp.ne.s32.totalorder %s75, %s76
      %p85 = scmp.eq.s32.totalorder %s23, 0
      %p86 = por %p84, %p85
      %p87 = scmp.ne.s32.totalorder %s75, %s76
      %p88 = scmp.eq.s32.totalorder %s24, 1
      %p89 = por %p87, %p88
      %p91 = scmp.ne.s32.totalorder %s76, %s90
      %p92 = scmp.eq.s32.totalorder %s24, 0
      %p93 = por %p91, %p92
      %s95 = sadd.s32 %s94, 1
      %p98 = scmp.eq.s32.totalorder %s18, 1
      %p99 = scmp.ne.s32.totalorder %s94, %s96
      %p100 = scmp.eq.s32.totalorder %s18, 0
      %p101 = por %p99, %p100
      %p102 = scmp.ne.s32.totalorder %s94, %s96
      %p103 = scmp.eq.s32.totalorder %s23, 1
      %p104 = por %p102, %p103
      %p105 = scmp.ne.s32.totalorder %s96, %s97
      %p106 = scmp.eq.s32.totalorder %s23, 0
      %p107 = por %p105, %p106
      %p108 = scmp.ne.s32.totalorder %s96, %s97
      %p109 = scmp.eq.s32.totalorder %s24, 1
      %p110 = por %p108, %p109
      %p112 = scmp.ne.s32.totalorder %s97, %s111
      %p113 = scmp.eq.s32.totalorder %s24, 0
      %p114 = por %p112, %p113
      %s116 = sadd.s32 %s115, 1
      %p119 = scmp.eq.s32.totalorder %s18, 1
      %p120 = scmp.ne.s32.totalorder %s115, %s117
      %p121 = scmp.eq.s32.totalorder %s18, 0
      %p122 = por %p120, %p121
      %p123 = scmp.ne.s32.totalorder %s115, %s117
      %p124 = scmp.eq.s32.totalorder %s23, 1
      %p125 = por %p123, %p124
      %p126 = scmp.ne.s32.totalorder %s117, %s118
      %p127 = scmp.eq.s32.totalorder %s23, 0
      %p128 = por %p126, %p127
      %p129 = scmp.ne.s32.totalorder %s117, %s118
      %p130 = scmp.eq.s32.totalorder %s24, 1
      %p131 = por %p129, %p130
      %p133 = scmp.ne.s32.totalorder %s118, %s132
      %p134 = scmp.eq.s32.totalorder %s24, 0
      %p135 = por %p133, %p134
      %s137 = sadd.s32 %s136, 1
      %p140 = scmp.eq.s32.totalorder %s18, 1
      %p141 = scmp.ne.s32.totalorder %s136, %s138
      %p142 = scmp.eq.s32.totalorder %s18, 0
      %p143 = por %p141, %p142
      %p144 = scmp.ne.s32.totalorder %s136, %s138
      %p145 = scmp.eq.s32.totalorder %s23, 1
      %p146 = por %p144, %p145
      %p147 = scmp.ne.s32.totalorder %s138, %s139
      %p148 = scmp.eq.s32.totalorder %s23, 0
      %p149 = por %p147, %p148
      %p150 = scmp.ne.s32.totalorder %s138, %s139
      %p151 = scmp.eq.s32.totalorder %s24, 1
      %p152 = por %p150, %p151
      %p154 = scmp.ne.s32.totalorder %s139, %s153
      %p155 = scmp.eq.s32.totalorder %s24, 0
      %p156 = por %p154, %p155
      %s158 = sadd.s32 %s157, 1
      %p161 = scmp.eq.s32.totalorder %s18, 1
      %p162 = scmp.ne.s32.totalorder %s157, %s159
      %p163 = scmp.eq.s32.totalorder %s18, 0
      %p164 = por %p162, %p163
      %p165 = scmp.ne.s32.totalorder %s157, %s159
      %p166 = scmp.eq.s32.totalorder %s23, 1
      %p167 = por %p165, %p166
      %p168 = scmp.ne.s32.totalorder %s159, %s160
      %p169 = scmp.eq.s32.totalorder %s23, 0
      %p170 = por %p168, %p169
      %p171 = scmp.ne.s32.totalorder %s159, %s160
      %p172 = scmp.eq.s32.totalorder %s24, 1
      %p173 = por %p171, %p172
      %p175 = scmp.ne.s32.totalorder %s160, %s174
      %p176 = scmp.eq.s32.totalorder %s24, 0
      %p177 = por %p175, %p176
      %s178 = ssub.s32 %s18, %s25
      %p179 = scmp.eq.s32.totalorder %s178, 0
      %s181 = sadd.s32 %s180, 1
      %s182 = scalar_select %p179, %s180, %s181
      %p185 = pneg %p179
      %p186 = scmp.eq.s32.totalorder %s18, 1
      %p187 = por %p185, %p186
      %p188 = scmp.ne.s32.totalorder %s180, %s183
      %p189 = scmp.eq.s32.totalorder %s18, 0
      %p190 = por %p188, %p189
      %p191 = scmp.ne.s32.totalorder %s180, %s183
      %p192 = scmp.eq.s32.totalorder %s23, 1
      %p193 = por %p191, %p192
      %p194 = scmp.ne.s32.totalorder %s183, %s184
      %p195 = scmp.eq.s32.totalorder %s23, 0
      %p196 = por %p194, %p195
      %p197 = scmp.ne.s32.totalorder %s183, %s184
      %p198 = scmp.eq.s32.totalorder %s24, 1
      %p199 = por %p197, %p198
      %p201 = scmp.ne.s32.totalorder %s184, %s200
      %p202 = scmp.eq.s32.totalorder %s24, 0
      %p203 = por %p201, %p202
      %p204 = scmp.le.s32.totalorder 1, %s18
      %p205 = scmp.lt.s32.totalorder %s18, 3
      %p206 = pnand %p204, %p205
      %p207 = pneg %p206
      // Predicated region
      $region9: #{tpu_custom_call.1} parent=5 // pred_check
        _
      $region10: #{tpu_custom_call.1} parent=5 // pred_check_branch
        %209 = sbr.rel (%p206) target = $region12
      $region11: #{tpu_custom_call.1} parent=5 // pred_region
        %s210 = ssub.s32 %s18, 1
        // Predicated region
        $region13: #{tpu_custom_call.1} parent=11 // pred_check
          %p211 = pneg %p65
        $region14: #{tpu_custom_call.1} parent=11 // pred_check_branch
          %213 = sbr.rel (%p211) target = $region16
        $region15: #{tpu_custom_call.1} parent=11 // pred_region
          _
        $region16: #{tpu_custom_call.1} parent=11 // pred_fallthru
          _
        // Predicated region
        $region17: #{tpu_custom_call.1} parent=11 // pred_check
          %p214 = pneg %p86
        $region18: #{tpu_custom_call.1} parent=11 // pred_check_branch
          %216 = sbr.rel (%p214) target = $region20
        $region19: #{tpu_custom_call.1} parent=11 // pred_region
          _
        $region20: #{tpu_custom_call.1} parent=11 // pred_fallthru
          _
        // Predicated region
        $region21: #{tpu_custom_call.1} parent=11 // pred_check
          %p217 = pneg %p107
        $region22: #{tpu_custom_call.1} parent=11 // pred_check_branch
          %219 = sbr.rel (%p217) target = $region24
        $region23: #{tpu_custom_call.1} parent=11 // pred_region
          _
        $region24: #{tpu_custom_call.1} parent=11 // pred_fallthru
          _
        // Predicated region
        $region25: #{tpu_custom_call.1} parent=11 // pred_check
          %p220 = pneg %p128
        $region26: #{tpu_custom_call.1} parent=11 // pred_check_branch
          %222 = sbr.rel (%p220) target = $region28
        $region27: #{tpu_custom_call.1} parent=11 // pred_region
          _
        $region28: #{tpu_custom_call.1} parent=11 // pred_fallthru
          _
        // Predicated region
        $region29: #{tpu_custom_call.1} parent=11 // pred_check
          %p223 = pneg %p149
        $region30: #{tpu_custom_call.1} parent=11 // pred_check_branch
          %225 = sbr.rel (%p223) target = $region32
        $region31: #{tpu_custom_call.1} parent=11 // pred_region
          _
        $region32: #{tpu_custom_call.1} parent=11 // pred_fallthru
          _
        // Predicated region
        $region33: #{tpu_custom_call.1} parent=11 // pred_check
          %p226 = pneg %p170
        $region34: #{tpu_custom_call.1} parent=11 // pred_check_branch
          %228 = sbr.rel (%p226) target = $region36
        $region35: #{tpu_custom_call.1} parent=11 // pred_region
          _
        $region36: #{tpu_custom_call.1} parent=11 // pred_fallthru
          _
      $region12: #{tpu_custom_call.1} parent=5 // pred_fallthru
        _
      %p229 = scmp.lt.s32.totalorder %s18, 2
      // Predicated region
      $region37: #{tpu_custom_call.1} parent=5 // pred_check
        %p230 = pneg %p229
      $region38: #{tpu_custom_call.1} parent=5 // pred_check_branch
        %232 = sbr.rel (%p230) target = $region40
      $region39: #{tpu_custom_call.1} parent=5 // pred_region
        // Predicated region
        $region41: #{tpu_custom_call.1} parent=39 // pred_check
          %p233 = pneg %p38
        $region42: #{tpu_custom_call.1} parent=39 // pred_check_branch
          %235 = sbr.rel (%p233) target = $region44
        $region43: #{tpu_custom_call.1} parent=39 // pred_region
          %s236 = smul.u32 4, %s18
          %p237 = scmp.lt.s32.totalorder %s236, 7
          %s238 = scalar_select %p237, %s236, 7
          %s239 = smul.addr %s238, 2
          %s240 = scalar_lea.vmem %s0, %s239
          %s241 = smul.u32 4, %s18
        $region44: #{tpu_custom_call.1} parent=39 // pred_fallthru
          _
      $region40: #{tpu_custom_call.1} parent=5 // pred_fallthru
        _
      %p242 = scmp.le.s32.totalorder 1, %s18
      %p243 = scmp.lt.s32.totalorder %s18, 3
      %p244 = pnand %p242, %p243
      %p245 = pneg %p244
      // Predicated region
      $region45: #{tpu_custom_call.1} parent=5 // pred_check
        _
      $region46: #{tpu_custom_call.1} parent=5 // pred_check_branch
        %247 = sbr.rel (%p244) target = $region48
      $region47: #{tpu_custom_call.1} parent=5 // pred_region
        %s248 = ssub.s32 %s18, 1
        %s249 = smul.u32 4, %s23
        %p250 = scmp.lt.s32.totalorder %s249, 7
        %s251 = scalar_select %p250, %s249, 7
        %s252 = smul.addr %s251, 2
        %s253 = scalar_lea.vmem %s0, %s252
        %p254 = pneg %p44
        %p255 = pneg %p41
        %p256 = pneg %p65
        %p257 = pneg %p62
        %p258 = pneg %p86
        %p259 = pneg %p83
        %p260 = pneg %p107
        %p261 = pneg %p104
        %p262 = pneg %p128
        %p263 = pneg %p125
        %p264 = pneg %p149
        %p265 = pneg %p146
        %p266 = pneg %p170
        %p267 = pneg %p167
        %p268 = pneg %p196
        %p269 = pneg %p193
        %s270 = sand.u32 %s183, 1
        %s271 = scalar_lea.sflag [#allocation4], %s270
        %s272 = sand.u32 %s183, 1
        %s273 = smul.addr %s272, 4
        %s274 = scalar_lea.vmem [#allocation3], %s273
        %s275 = smul.u32 4, %s23
        %p276 = scmp.lt.s32.totalorder %s275, 7
        %s277 = scalar_select %p276, %s275, 7
        %s278 = smul.addr %s277, 2
        %s279 = scalar_lea.vmem %s0, %s278
        %s280 = smul.u32 4, %s23
        %s281 = smul.u32 4, %s23
        %v282 = vld [vmem:[%s279] sm:$0xff]
        %v283 = vld [vmem:[%s1] sm:$0xff]
        %v284 = vld [vmem:[%s1 + $0x8] sm:$0xff]
        %v285 = vld [vmem:[%s1 + $0x10] sm:$0xff]
        %v286 = vld [vmem:[%s1 + $0x18] sm:$0xff]
        %v287 = vld [vmem:[%s1 + $0x20] sm:$0xff]
        %v288 = vld [vmem:[%s1 + $0x28] sm:$0xff]
        %v289 = vld [vmem:[%s1 + $0x30] sm:$0xff]
        %v290 = vld [vmem:[%s1 + $0x38] sm:$0xff]
        %v291 = vld [vmem:[%s2] sm:$0xff]
        %v292 = vld [vmem:[%s2 + $0x8] sm:$0xff]
        %v293 = vld [vmem:[%s2 + $0x10] sm:$0xff]
        %v294 = vld [vmem:[%s2 + $0x18] sm:$0xff]
        %v295 = vld [vmem:[%s2 + $0x20] sm:$0xff]
        %v296 = vld [vmem:[%s2 + $0x28] sm:$0xff]
        %v297 = vld [vmem:[%s2 + $0x30] sm:$0xff]
        %v298 = vld [vmem:[%s2 + $0x38] sm:$0xff]
        %300 = vset.pattern.permute.xlu0 0
        %301 = vperm.xlu0 %300, %v291
        %v302 = vpop.permute.xlu0 %301
        %305 = vset.pattern.permute.xlu0 0
        %306 = vperm.xlu0 %305, %v292
        %v307 = vpop.permute.xlu0 %306
        %310 = vset.pattern.permute.xlu0 0
        %311 = vperm.xlu0 %310, %v293
        %v312 = vpop.permute.xlu0 %311
        %315 = vset.pattern.permute.xlu0 0
        %316 = vperm.xlu0 %315, %v294
        %v317 = vpop.permute.xlu0 %316
        %320 = vset.pattern.permute.xlu0 0
        %321 = vperm.xlu0 %320, %v295
        %v322 = vpop.permute.xlu0 %321
        %325 = vset.pattern.permute.xlu0 0
        %326 = vperm.xlu0 %325, %v296
        %v327 = vpop.permute.xlu0 %326
        %330 = vset.pattern.permute.xlu0 0
        %331 = vperm.xlu0 %330, %v297
        %v332 = vpop.permute.xlu0 %331
        %335 = vset.pattern.permute.xlu0 0
        %336 = vperm.xlu0 %335, %v298
        %v337 = vpop.permute.xlu0 %336
        %v340 = vcombine.high %v282, %v282
        %v342 = vunpack.c.l.s4 1983009808
        %v343 = vunpack.c.0.s8 %v342
        %v344 = vlaneseq
        %v345 = vshrl.u32 %v344, 7
        %v346 = vsub.s32 %v343, %v345
        %v347 = vrot.slane %v282, %v346
        %v349 = vunpack.c.l.s4 1983009808
        %v350 = vunpack.c.0.s8 %v349
        %v351 = vlaneseq
        %v352 = vshrl.u32 %v351, 7
        %v353 = vsub.s32 %v350, %v352
        %v354 = vrot.slane %v340, %v353
        %v355 = vcombine.high %v347, %v347
        %v356 = vcombine.high %v354, %v354
        %vm357 = vcmask 15360
        %v359 = vsel %vm357, %v283, 0
        %v362 = vsel %vm357, %v284, 0
        %v365 = vsel %vm357, %v285, 0
        %v368 = vsel %vm357, %v286, 0
        %v371 = vsel %vm357, %v287, 0
        %v374 = vsel %vm357, %v288, 0
        %v377 = vsel %vm357, %v289, 0
        %v380 = vsel %vm357, %v290, 0
        %vm382 = vcmask 1041408
        %v383 = vsel %vm382, %v347, 0
        %v385 = vsel %vm382, %v355, 0
        %v387 = vsel %vm382, %v354, 0
        %v389 = vsel %vm382, %v356, 0
        %391 = vmatprep.subr.mxu0 %v385
        %392 = vmatpush1.msra.mxu0 %v383
        %393 = vmatprep.subr.mxu0 0.0
        %394 = vmatpush1.msra.mxu0 0.0
        %395 = vmatprep.subr.mxu0 0.0
        %396 = vmatpush1.msra.mxu0 0.0
        %397 = vmatprep.subr.mxu0 0.0
        %398 = vmatpush1.msra.mxu0 0.0
        %399 = vmatprep.subr.mxu0 0.0
        %400 = vmatpush1.msra.mxu0 0.0
        %401 = vmatprep.subr.mxu0 0.0
        %402 = vmatpush1.msra.mxu0 0.0
        %403 = vmatprep.subr.mxu0 0.0
        %404 = vmatpush1.msra.mxu0 0.0
        %405 = vmatprep.subr.mxu0 0.0
        %406 = vmatpush1.msra.mxu0 0.0
        %407 = vmatprep.subr.mxu0 0.0
        %408 = vmatpush1.msra.mxu0 0.0
        %409 = vmatprep.subr.mxu0 0.0
        %410 = vmatpush1.msra.mxu0 0.0
        %411 = vmatprep.subr.mxu0 0.0
        %412 = vmatpush1.msra.mxu0 0.0
        %413 = vmatprep.subr.mxu0 0.0
        %414 = vmatpush1.msra.mxu0 0.0
        %415 = vmatprep.subr.mxu0 0.0
        %416 = vmatpush1.msra.mxu0 0.0
        %417 = vmatprep.subr.mxu0 0.0
        %418 = vmatpush1.msra.mxu0 0.0
        %419 = vmatprep.subr.mxu0 0.0
        %420 = vmatpush1.msra.mxu0 0.0
        %421 = vmatprep.subr.mxu0 0.0
        %422 = vmatpush1.msra.mxu0 0.0
        %423 = vmatprep.subr.mxu0 0.0
        %424 = vmatpush1.msra.mxu0 0.0
        %425 = vmatprep.subr.mxu0 0.0
        %426 = vmatpush1.msra.mxu0 0.0
        %427 = vmatprep.subr.mxu0 0.0
        %428 = vmatpush1.msra.mxu0 0.0
        %429 = vmatprep.subr.mxu0 0.0
        %430 = vmatpush1.msra.mxu0 0.0
        %431 = vmatprep.subr.mxu0 0.0
        %432 = vmatpush1.msra.mxu0 0.0
        %433 = vmatprep.subr.mxu0 0.0
        %434 = vmatpush1.msra.mxu0 0.0
        %435 = vmatprep.subr.mxu0 0.0
        %436 = vmatpush1.msra.mxu0 0.0
        %437 = vmatprep.subr.mxu0 0.0
        %438 = vmatpush1.msra.mxu0 0.0
        %439 = vmatprep.subr.mxu0 0.0
        %440 = vmatpush1.msra.mxu0 0.0
        %441 = vmatprep.subr.mxu0 0.0
        %442 = vmatpush1.msra.mxu0 0.0
        %443 = vmatprep.subr.mxu0 0.0
        %444 = vmatpush1.msra.mxu0 0.0
        %445 = vmatprep.subr.mxu0 0.0
        %446 = vmatpush1.msra.mxu0 0.0
        %447 = vmatprep.subr.mxu0 0.0
        %448 = vmatpush1.msra.mxu0 0.0
        %449 = vmatprep.subr.mxu0 0.0
        %450 = vmatpush1.msra.mxu0 0.0
        %451 = vmatprep.subr.mxu0 0.0
        %452 = vmatpush1.msra.mxu0 0.0
        %453 = vmatprep.subr.mxu0 0.0
        %454 = vmatpush1.msra.mxu0 0.0
        %455 = vmatprep.mubr.f32.mxu0 0.0
        %456 = vmatmul.mubr.f32.gmra.mrb[0].mxu0 %v359
        %v457 = vpop.f32.mrb[0].mxu0
        %v458 = vadd.f32 %v302, %v457
        %v459 = vpop.f32.mrb[0].mxu0
        %v460 = vadd.f32 %v302, %v459
        %461 = vmatprep.mubr.f32.mxu0 0.0
        %462 = vmatmul.mubr.f32.gmra.mrb[0].mxu0 %v362
        %v463 = vpop.f32.mrb[0].mxu0
        %v464 = vadd.f32 %v307, %v463
        %v465 = vpop.f32.mrb[0].mxu0
        %v466 = vadd.f32 %v307, %v465
        %467 = vmatprep.mubr.f32.mxu0 0.0
        %468 = vmatmul.mubr.f32.gmra.mrb[0].mxu0 %v365
        %v469 = vpop.f32.mrb[0].mxu0
        %v470 = vadd.f32 %v312, %v469
        %v471 = vpop.f32.mrb[0].mxu0
        %v472 = vadd.f32 %v312, %v471
        %473 = vmatprep.mubr.f32.mxu0 0.0
        %474 = vmatmul.mubr.f32.gmra.mrb[0].mxu0 %v368
        %v475 = vpop.f32.mrb[0].mxu0
        %v476 = vadd.f32 %v317, %v475
        %v477 = vpop.f32.mrb[0].mxu0
        %v478 = vadd.f32 %v317, %v477
        %479 = vmatprep.mubr.f32.mxu0 0.0
        %480 = vmatmul.mubr.f32.gmra.mrb[0].mxu0 %v371
        %v481 = vpop.f32.mrb[0].mxu0
        %v482 = vadd.f32 %v322, %v481
        %v483 = vpop.f32.mrb[0].mxu0
        %v484 = vadd.f32 %v322, %v483
        %485 = vmatprep.mubr.f32.mxu0 0.0
        %486 = vmatmul.mubr.f32.gmra.mrb[0].mxu0 %v374
        %v487 = vpop.f32.mrb[0].mxu0
        %v488 = vadd.f32 %v327, %v487
        %v489 = vpop.f32.mrb[0].mxu0
        %v490 = vadd.f32 %v327, %v489
        %491 = vmatprep.mubr.f32.mxu0 0.0
        %492 = vmatmul.mubr.f32.gmra.mrb[0].mxu0 %v377
        %v493 = vpop.f32.mrb[0].mxu0
        %v494 = vadd.f32 %v332, %v493
        %v495 = vpop.f32.mrb[0].mxu0
        %v496 = vadd.f32 %v332, %v495
        %497 = vmatprep.mubr.f32.mxu0 0.0
        %498 = vmatmul.mubr.f32.gmra.mrb[0].mxu0 %v380
        %v499 = vpop.f32.mrb[0].mxu0
        %v500 = vadd.f32 %v337, %v499
        %v501 = vpop.f32.mrb[0].mxu0
        %v502 = vadd.f32 %v337, %v501
        %503 = vdwg.mxu0
        %504 = vmatprep.subr.mxu0 %v389
        %505 = vmatpush1.msra.mxu0 %v387
        %506 = vmatprep.subr.mxu0 0.0
        %507 = vmatpush1.msra.mxu0 0.0
        %508 = vmatprep.subr.mxu0 0.0
        %509 = vmatpush1.msra.mxu0 0.0
        %510 = vmatprep.subr.mxu0 0.0
        %511 = vmatpush1.msra.mxu0 0.0
        %512 = vmatprep.subr.mxu0 0.0
        %513 = vmatpush1.msra.mxu0 0.0
        %514 = vmatprep.subr.mxu0 0.0
        %515 = vmatpush1.msra.mxu0 0.0
        %516 = vmatprep.subr.mxu0 0.0
        %517 = vmatpush1.msra.mxu0 0.0
        %518 = vmatprep.subr.mxu0 0.0
        %519 = vmatpush1.msra.mxu0 0.0
        %520 = vmatprep.subr.mxu0 0.0
        %521 = vmatpush1.msra.mxu0 0.0
        %522 = vmatprep.subr.mxu0 0.0
        %523 = vmatpush1.msra.mxu0 0.0
        %524 = vmatprep.subr.mxu0 0.0
        %525 = vmatpush1.msra.mxu0 0.0
        %526 = vmatprep.subr.mxu0 0.0
        %527 = vmatpush1.msra.mxu0 0.0
        %528 = vmatprep.subr.mxu0 0.0
        %529 = vmatpush1.msra.mxu0 0.0
        %530 = vmatprep.subr.mxu0 0.0
        %531 = vmatpush1.msra.mxu0 0.0
        %532 = vmatprep.subr.mxu0 0.0
        %533 = vmatpush1.msra.mxu0 0.0
        %534 = vmatprep.subr.mxu0 0.0
        %535 = vmatpush1.msra.mxu0 0.0
        %536 = vmatprep.subr.mxu0 0.0
        %537 = vmatpush1.msra.mxu0 0.0
        %538 = vmatprep.subr.mxu0 0.0
        %539 = vmatpush1.msra.mxu0 0.0
        %540 = vmatprep.subr.mxu0 0.0
        %541 = vmatpush1.msra.mxu0 0.0
        %542 = vmatprep.subr.mxu0 0.0
        %543 = vmatpush1.msra.mxu0 0.0
        %544 = vmatprep.subr.mxu0 0.0
        %545 = vmatpush1.msra.mxu0 0.0
        %546 = vmatprep.subr.mxu0 0.0
        %547 = vmatpush1.msra.mxu0 0.0
        %548 = vmatprep.subr.mxu0 0.0
        %549 = vmatpush1.msra.mxu0 0.0
        %550 = vmatprep.subr.mxu0 0.0
        %551 = vmatpush1.msra.mxu0 0.0
        %552 = vmatprep.subr.mxu0 0.0
        %553 = vmatpush1.msra.mxu0 0.0
        %554 = vmatprep.subr.mxu0 0.0
        %555 = vmatpush1.msra.mxu0 0.0
        %556 = vmatprep.subr.mxu0 0.0
        %557 = vmatpush1.msra.mxu0 0.0
        %558 = vmatprep.subr.mxu0 0.0
        %559 = vmatpush1.msra.mxu0 0.0
        %560 = vmatprep.subr.mxu0 0.0
        %561 = vmatpush1.msra.mxu0 0.0
        %562 = vmatprep.subr.mxu0 0.0
        %563 = vmatpush1.msra.mxu0 0.0
        %564 = vmatprep.subr.mxu0 0.0
        %565 = vmatpush1.msra.mxu0 0.0
        %566 = vmatprep.subr.mxu0 0.0
        %567 = vmatpush1.msra.mxu0 0.0
        %568 = vmatprep.mubr.f32.mxu0 0.0
        %569 = vmatmul.mubr.f32.gmra.mrb[0].mxu0 %v359
        %v570 = vpop.f32.mrb[0].mxu0
        %v571 = vadd.f32 %v302, %v570
        %v572 = vpop.f32.mrb[0].mxu0
        %v573 = vadd.f32 %v302, %v572
        %574 = vmatprep.mubr.f32.mxu0 0.0
        %575 = vmatmul.mubr.f32.gmra.mrb[0].mxu0 %v362
        %v576 = vpop.f32.mrb[0].mxu0
        %v577 = vadd.f32 %v307, %v576
        %v578 = vpop.f32.mrb[0].mxu0
        %v579 = vadd.f32 %v307, %v578
        %580 = vmatprep.mubr.f32.mxu0 0.0
        %581 = vmatmul.mubr.f32.gmra.mrb[0].mxu0 %v365
        %v582 = vpop.f32.mrb[0].mxu0
        %v583 = vadd.f32 %v312, %v582
        %v584 = vpop.f32.mrb[0].mxu0
        %v585 = vadd.f32 %v312, %v584
        %586 = vmatprep.mubr.f32.mxu0 0.0
        %587 = vmatmul.mubr.f32.gmra.mrb[0].mxu0 %v368
        %v588 = vpop.f32.mrb[0].mxu0
        %v589 = vadd.f32 %v317, %v588
        %v590 = vpop.f32.mrb[0].mxu0
        %v591 = vadd.f32 %v317, %v590
        %592 = vmatprep.mubr.f32.mxu0 0.0
        %593 = vmatmul.mubr.f32.gmra.mrb[0].mxu0 %v371
        %v594 = vpop.f32.mrb[0].mxu0
        %v595 = vadd.f32 %v322, %v594
        %v596 = vpop.f32.mrb[0].mxu0
        %v597 = vadd.f32 %v322, %v596
        %598 = vmatprep.mubr.f32.mxu0 0.0
        %599 = vmatmul.mubr.f32.gmra.mrb[0].mxu0 %v374
        %v600 = vpop.f32.mrb[0].mxu0
        %v601 = vadd.f32 %v327, %v600
        %v602 = vpop.f32.mrb[0].mxu0
        %v603 = vadd.f32 %v327, %v602
        %604 = vmatprep.mubr.f32.mxu0 0.0
        %605 = vmatmul.mubr.f32.gmra.mrb[0].mxu0 %v377
        %v606 = vpop.f32.mrb[0].mxu0
        %v607 = vadd.f32 %v332, %v606
        %v608 = vpop.f32.mrb[0].mxu0
        %v609 = vadd.f32 %v332, %v608
        %610 = vmatprep.mubr.f32.mxu0 0.0
        %611 = vmatmul.mubr.f32.gmra.mrb[0].mxu0 %v380
        %v612 = vpop.f32.mrb[0].mxu0
        %v613 = vadd.f32 %v337, %v612
        %v614 = vpop.f32.mrb[0].mxu0
        %v615 = vadd.f32 %v337, %v614
        %616 = vdwg.mxu0
        %v617 = vxor.u32 %v458, 2147483648
        %v618 = vxor.u32 %v460, 2147483648
        %v619 = vxor.u32 %v571, 2147483648
        %v620 = vxor.u32 %v573, 2147483648
        %v621 = vxor.u32 %v464, 2147483648
        %v622 = vxor.u32 %v466, 2147483648
        %v623 = vxor.u32 %v577, 2147483648
        %v624 = vxor.u32 %v579, 2147483648
        %v625 = vxor.u32 %v470, 2147483648
        %v626 = vxor.u32 %v472, 2147483648
        %v627 = vxor.u32 %v583, 2147483648
        %v628 = vxor.u32 %v585, 2147483648
        %v629 = vxor.u32 %v476, 2147483648
        %v630 = vxor.u32 %v478, 2147483648
        %v631 = vxor.u32 %v589, 2147483648
        %v632 = vxor.u32 %v591, 2147483648
        %v633 = vxor.u32 %v482, 2147483648
        %v634 = vxor.u32 %v484, 2147483648
        %v635 = vxor.u32 %v595, 2147483648
        %v636 = vxor.u32 %v597, 2147483648
        %v637 = vxor.u32 %v488, 2147483648
        %v638 = vxor.u32 %v490, 2147483648
        %v639 = vxor.u32 %v601, 2147483648
        %v640 = vxor.u32 %v603, 2147483648
        %v641 = vxor.u32 %v494, 2147483648
        %v642 = vxor.u32 %v496, 2147483648
        %v643 = vxor.u32 %v607, 2147483648
        %v644 = vxor.u32 %v609, 2147483648
        %v645 = vxor.u32 %v500, 2147483648
        %v646 = vxor.u32 %v502, 2147483648
        %v647 = vxor.u32 %v613, 2147483648
        %v648 = vxor.u32 %v615, 2147483648
        %v649 = vmul.f32 %v617, 1.442695
        %v650 = vpow.pop %v649
        %v651 = vmul.f32 %v618, 1.442695
        %v652 = vpow.pop %v651
        %v653 = vmul.f32 %v619, 1.442695
        %v654 = vpow.pop %v653
        %v655 = vmul.f32 %v620, 1.442695
        %v656 = vpow.pop %v655
        %v657 = vmul.f32 %v621, 1.442695
        %v658 = vpow.pop %v657
        %v659 = vmul.f32 %v622, 1.442695
        %v660 = vpow.pop %v659
        %v661 = vmul.f32 %v623, 1.442695
        %v662 = vpow.pop %v661
        %v663 = vmul.f32 %v624, 1.442695
        %v664 = vpow.pop %v663
        %v665 = vmul.f32 %v625, 1.442695
        %v666 = vpow.pop %v665
        %v667 = vmul.f32 %v626, 1.442695
        %v668 = vpow.pop %v667
        %v669 = vmul.f32 %v627, 1.442695
        %v670 = vpow.pop %v669
        %v671 = vmul.f32 %v628, 1.442695
        %v672 = vpow.pop %v671
        %v673 = vmul.f32 %v629, 1.442695
        %v674 = vpow.pop %v673
        %v675 = vmul.f32 %v630, 1.442695
        %v676 = vpow.pop %v675
        %v677 = vmul.f32 %v631, 1.442695
        %v678 = vpow.pop %v677
        %v679 = vmul.f32 %v632, 1.442695
        %v680 = vpow.pop %v679
        %v681 = vmul.f32 %v633, 1.442695
        %v682 = vpow.pop %v681
        %v683 = vmul.f32 %v634, 1.442695
        %v684 = vpow.pop %v683
        %v685 = vmul.f32 %v635, 1.442695
        %v686 = vpow.pop %v685
        %v687 = vmul.f32 %v636, 1.442695
        %v688 = vpow.pop %v687
        %v689 = vmul.f32 %v637, 1.442695
        %v690 = vpow.pop %v689
        %v691 = vmul.f32 %v638, 1.442695
        %v692 = vpow.pop %v691
        %v693 = vmul.f32 %v639, 1.442695
        %v694 = vpow.pop %v693
        %v695 = vmul.f32 %v640, 1.442695
        %v696 = vpow.pop %v695
        %v697 = vmul.f32 %v641, 1.442695
        %v698 = vpow.pop %v697
        %v699 = vmul.f32 %v642, 1.442695
        %v700 = vpow.pop %v699
        %v701 = vmul.f32 %v643, 1.442695
        %v702 = vpow.pop %v701
        %v703 = vmul.f32 %v644, 1.442695
        %v704 = vpow.pop %v703
        %v705 = vmul.f32 %v645, 1.442695
        %v706 = vpow.pop %v705
        %v707 = vmul.f32 %v646, 1.442695
        %v708 = vpow.pop %v707
        %v709 = vmul.f32 %v647, 1.442695
        %v710 = vpow.pop %v709
        %v711 = vmul.f32 %v648, 1.442695
        %v712 = vpow.pop %v711
        %v713 = vadd.f32 %v650, 1.0
        %v714 = vadd.f32 %v652, 1.0
        %v715 = vadd.f32 %v654, 1.0
        %v716 = vadd.f32 %v656, 1.0
        %v717 = vadd.f32 %v658, 1.0
        %v718 = vadd.f32 %v660, 1.0
        %v719 = vadd.f32 %v662, 1.0
        %v720 = vadd.f32 %v664, 1.0
        %v721 = vadd.f32 %v666, 1.0
        %v722 = vadd.f32 %v668, 1.0
        %v723 = vadd.f32 %v670, 1.0
        %v724 = vadd.f32 %v672, 1.0
        %v725 = vadd.f32 %v674, 1.0
        %v726 = vadd.f32 %v676, 1.0
        %v727 = vadd.f32 %v678, 1.0
        %v728 = vadd.f32 %v680, 1.0
        %v729 = vadd.f32 %v682, 1.0
        %v730 = vadd.f32 %v684, 1.0
        %v731 = vadd.f32 %v686, 1.0
        %v732 = vadd.f32 %v688, 1.0
        %v733 = vadd.f32 %v690, 1.0
        %v734 = vadd.f32 %v692, 1.0
        %v735 = vadd.f32 %v694, 1.0
        %v736 = vadd.f32 %v696, 1.0
        %v737 = vadd.f32 %v698, 1.0
        %v738 = vadd.f32 %v700, 1.0
        %v739 = vadd.f32 %v702, 1.0
        %v740 = vadd.f32 %v704, 1.0
        %v741 = vadd.f32 %v706, 1.0
        %v742 = vadd.f32 %v708, 1.0
        %v743 = vadd.f32 %v710, 1.0
        %v744 = vadd.f32 %v712, 1.0
        %v745 = vrcp.pop %v713
        %v746 = vmul.f32 1.0, %v745
        %v747 = vrcp.pop %v714
        %v748 = vmul.f32 1.0, %v747
        %v749 = vrcp.pop %v715
        %v750 = vmul.f32 1.0, %v749
        %v751 = vrcp.pop %v716
        %v752 = vmul.f32 1.0, %v751
        %v753 = vrcp.pop %v717
        %v754 = vmul.f32 1.0, %v753
        %v755 = vrcp.pop %v718
        %v756 = vmul.f32 1.0, %v755
        %v757 = vrcp.pop %v719
        %v758 = vmul.f32 1.0, %v757
        %v759 = vrcp.pop %v720
        %v760 = vmul.f32 1.0, %v759
        %v761 = vrcp.pop %v721
        %v762 = vmul.f32 1.0, %v761
        %v763 = vrcp.pop %v722
        %v764 = vmul.f32 1.0, %v763
        %v765 = vrcp.pop %v723
        %v766 = vmul.f32 1.0, %v765
        %v767 = vrcp.pop %v724
        %v768 = vmul.f32 1.0, %v767
        %v769 = vrcp.pop %v725
        %v770 = vmul.f32 1.0, %v769
        %v771 = vrcp.pop %v726
        %v772 = vmul.f32 1.0, %v771
        %v773 = vrcp.pop %v727
        %v774 = vmul.f32 1.0, %v773
        %v775 = vrcp.pop %v728
        %v776 = vmul.f32 1.0, %v775
        %v777 = vrcp.pop %v729
        %v778 = vmul.f32 1.0, %v777
        %v779 = vrcp.pop %v730
        %v780 = vmul.f32 1.0, %v779
        %v781 = vrcp.pop %v731
        %v782 = vmul.f32 1.0, %v781
        %v783 = vrcp.pop %v732
        %v784 = vmul.f32 1.0, %v783
        %v785 = vrcp.pop %v733
        %v786 = vmul.f32 1.0, %v785
        %v787 = vrcp.pop %v734
        %v788 = vmul.f32 1.0, %v787
        %v789 = vrcp.pop %v735
        %v790 = vmul.f32 1.0, %v789
        %v791 = vrcp.pop %v736
        %v792 = vmul.f32 1.0, %v791
        %v793 = vrcp.pop %v737
        %v794 = vmul.f32 1.0, %v793
        %v795 = vrcp.pop %v738
        %v796 = vmul.f32 1.0, %v795
        %v797 = vrcp.pop %v739
        %v798 = vmul.f32 1.0, %v797
        %v799 = vrcp.pop %v740
        %v800 = vmul.f32 1.0, %v799
        %v801 = vrcp.pop %v741
        %v802 = vmul.f32 1.0, %v801
        %v803 = vrcp.pop %v742
        %v804 = vmul.f32 1.0, %v803
        %v805 = vrcp.pop %v743
        %v806 = vmul.f32 1.0, %v805
        %v807 = vrcp.pop %v744
        %v808 = vmul.f32 1.0, %v807
        %v809 = vld [vmem:[%s3] sm:$0xff]
        %v810 = vld [vmem:[%s3 + $0x8] sm:$0xff]
        %v811 = vld [vmem:[%s3 + $0x10] sm:$0xff]
        %v812 = vld [vmem:[%s3 + $0x18] sm:$0xff]
        %v813 = vld [vmem:[%s3 + $0x20] sm:$0xff]
        %v814 = vld [vmem:[%s3 + $0x28] sm:$0xff]
        %v815 = vld [vmem:[%s3 + $0x30] sm:$0xff]
        %v816 = vld [vmem:[%s3 + $0x38] sm:$0xff]
        %v817 = vld [vmem:[%s4] sm:$0xff]
        %v818 = vld [vmem:[%s4 + $0x8] sm:$0xff]
        %v819 = vld [vmem:[%s4 + $0x10] sm:$0xff]
        %v820 = vld [vmem:[%s4 + $0x18] sm:$0xff]
        %v821 = vld [vmem:[%s4 + $0x20] sm:$0xff]
        %v822 = vld [vmem:[%s4 + $0x28] sm:$0xff]
        %v823 = vld [vmem:[%s4 + $0x30] sm:$0xff]
        %v824 = vld [vmem:[%s4 + $0x38] sm:$0xff]
        %826 = vset.pattern.permute.xlu0 0
        %827 = vperm.xlu0 %826, %v817
        %v828 = vpop.permute.xlu0 %827
        %831 = vset.pattern.permute.xlu0 0
        %832 = vperm.xlu0 %831, %v818
        %v833 = vpop.permute.xlu0 %832
        %836 = vset.pattern.permute.xlu0 0
        %837 = vperm.xlu0 %836, %v819
        %v838 = vpop.permute.xlu0 %837
        %841 = vset.pattern.permute.xlu0 0
        %842 = vperm.xlu0 %841, %v820
        %v843 = vpop.permute.xlu0 %842
        %846 = vset.pattern.permute.xlu0 0
        %847 = vperm.xlu0 %846, %v821
        %v848 = vpop.permute.xlu0 %847
        %851 = vset.pattern.permute.xlu0 0
        %852 = vperm.xlu0 %851, %v822
        %v853 = vpop.permute.xlu0 %852
        %856 = vset.pattern.permute.xlu0 0
        %857 = vperm.xlu0 %856, %v823
        %v858 = vpop.permute.xlu0 %857
        %861 = vset.pattern.permute.xlu0 0
        %862 = vperm.xlu0 %861, %v824
        %v863 = vpop.permute.xlu0 %862
        %vm865 = vcmask 523264
        %v867 = vsel %vm865, %v809, 0
        %v870 = vsel %vm865, %v810, 0
        %v873 = vsel %vm865, %v811, 0
        %v876 = vsel %vm865, %v812, 0
        %v879 = vsel %vm865, %v813, 0
        %v882 = vsel %vm865, %v814, 0
        %v885 = vsel %vm865, %v815, 0
        %v888 = vsel %vm865, %v816, 0
        %890 = vmatprep.subr.mxu0 %v748
        %891 = vmatpush1.msra.mxu0 %v746
        %892 = vmatprep.subr.mxu0 %v756
        %893 = vmatpush1.msra.mxu0 %v754
        %894 = vmatprep.subr.mxu0 %v764
        %895 = vmatpush1.msra.mxu0 %v762
        %896 = vmatprep.subr.mxu0 %v772
        %897 = vmatpush1.msra.mxu0 %v770
        %898 = vmatprep.subr.mxu0 %v780
        %899 = vmatpush1.msra.mxu0 %v778
        %900 = vmatprep.subr.mxu0 %v788
        %901 = vmatpush1.msra.mxu0 %v786
        %902 = vmatprep.subr.mxu0 %v796
        %903 = vmatpush1.msra.mxu0 %v794
        %904 = vmatprep.subr.mxu0 %v804
        %905 = vmatpush1.msra.mxu0 %v802
        %906 = vmatprep.subr.mxu0 0.0
        %907 = vmatpush1.msra.mxu0 0.0
        %908 = vmatprep.subr.mxu0 0.0
        %909 = vmatpush1.msra.mxu0 0.0
        %910 = vmatprep.subr.mxu0 0.0
        %911 = vmatpush1.msra.mxu0 0.0
        %912 = vmatprep.subr.mxu0 0.0
        %913 = vmatpush1.msra.mxu0 0.0
        %914 = vmatprep.subr.mxu0 0.0
        %915 = vmatpush1.msra.mxu0 0.0
        %916 = vmatprep.subr.mxu0 0.0
        %917 = vmatpush1.msra.mxu0 0.0
        %918 = vmatprep.subr.mxu0 0.0
        %919 = vmatpush1.msra.mxu0 0.0
        %920 = vmatprep.subr.mxu0 0.0
        %921 = vmatpush1.msra.mxu0 0.0
        %922 = vmatprep.subr.mxu0 0.0
        %923 = vmatpush1.msra.mxu0 0.0
        %924 = vmatprep.subr.mxu0 0.0
        %925 = vmatpush1.msra.mxu0 0.0
        %926 = vmatprep.subr.mxu0 0.0
        %927 = vmatpush1.msra.mxu0 0.0
        %928 = vmatprep.subr.mxu0 0.0
        %929 = vmatpush1.msra.mxu0 0.0
        %930 = vmatprep.subr.mxu0 0.0
        %931 = vmatpush1.msra.mxu0 0.0
        %932 = vmatprep.subr.mxu0 0.0
        %933 = vmatpush1.msra.mxu0 0.0
        %934 = vmatprep.subr.mxu0 0.0
        %935 = vmatpush1.msra.mxu0 0.0
        %936 = vmatprep.subr.mxu0 0.0
        %937 = vmatpush1.msra.mxu0 0.0
        %938 = vmatprep.subr.mxu0 0.0
        %939 = vmatpush1.msra.mxu0 0.0
        %940 = vmatprep.subr.mxu0 0.0
        %941 = vmatpush1.msra.mxu0 0.0
        %942 = vmatprep.subr.mxu0 0.0
        %943 = vmatpush1.msra.mxu0 0.0
        %944 = vmatprep.subr.mxu0 0.0
        %945 = vmatpush1.msra.mxu0 0.0
        %946 = vmatprep.subr.mxu0 0.0
        %947 = vmatpush1.msra.mxu0 0.0
        %948 = vmatprep.subr.mxu0 0.0
        %949 = vmatpush1.msra.mxu0 0.0
        %950 = vmatprep.subr.mxu0 0.0
        %951 = vmatpush1.msra.mxu0 0.0
        %952 = vmatprep.subr.mxu0 0.0
        %953 = vmatpush1.msra.mxu0 0.0
        %954 = vmatprep.mubr.f32.mxu0 0.0
        %955 = vmatmul.mubr.f32.gmra.mrb[0].mxu0 %v867
        %v956 = vpop.f32.mrb[0].mxu0
        %v957 = vadd.f32 %v828, %v956
        %v958 = vpop.f32.mrb[0].mxu0
        %v959 = vadd.f32 %v828, %v958
        %960 = vmatprep.mubr.f32.mxu0 0.0
        %961 = vmatmul.mubr.f32.gmra.mrb[0].mxu0 %v870
        %v962 = vpop.f32.mrb[0].mxu0
        %v963 = vadd.f32 %v833, %v962
        %v964 = vpop.f32.mrb[0].mxu0
        %v965 = vadd.f32 %v833, %v964
        %966 = vmatprep.mubr.f32.mxu0 0.0
        %967 = vmatmul.mubr.f32.gmra.mrb[0].mxu0 %v873
        %v968 = vpop.f32.mrb[0].mxu0
        %v969 = vadd.f32 %v838, %v968
        %v970 = vpop.f32.mrb[0].mxu0
        %v971 = vadd.f32 %v838, %v970
        %972 = vmatprep.mubr.f32.mxu0 0.0
        %973 = vmatmul.mubr.f32.gmra.mrb[0].mxu0 %v876
        %v974 = vpop.f32.mrb[0].mxu0
        %v975 = vadd.f32 %v843, %v974
        %v976 = vpop.f32.mrb[0].mxu0
        %v977 = vadd.f32 %v843, %v976
        %978 = vmatprep.mubr.f32.mxu0 0.0
        %979 = vmatmul.mubr.f32.gmra.mrb[0].mxu0 %v879
        %v980 = vpop.f32.mrb[0].mxu0
        %v981 = vadd.f32 %v848, %v980
        %v982 = vpop.f32.mrb[0].mxu0
        %v983 = vadd.f32 %v848, %v982
        %984 = vmatprep.mubr.f32.mxu0 0.0
        %985 = vmatmul.mubr.f32.gmra.mrb[0].mxu0 %v882
        %v986 = vpop.f32.mrb[0].mxu0
        %v987 = vadd.f32 %v853, %v986
        %v988 = vpop.f32.mrb[0].mxu0
        %v989 = vadd.f32 %v853, %v988
        %990 = vmatprep.mubr.f32.mxu0 0.0
        %991 = vmatmul.mubr.f32.gmra.mrb[0].mxu0 %v885
        %v992 = vpop.f32.mrb[0].mxu0
        %v993 = vadd.f32 %v858, %v992
        %v994 = vpop.f32.mrb[0].mxu0
        %v995 = vadd.f32 %v858, %v994
        %996 = vmatprep.mubr.f32.mxu0 0.0
        %997 = vmatmul.mubr.f32.gmra.mrb[0].mxu0 %v888
        %v998 = vpop.f32.mrb[0].mxu0
        %v999 = vadd.f32 %v863, %v998
        %v1000 = vpop.f32.mrb[0].mxu0
        %v1001 = vadd.f32 %v863, %v1000
        %1002 = vdwg.mxu0
        %1003 = vmatprep.subr.mxu0 %v752
        %1004 = vmatpush1.msra.mxu0 %v750
        %1005 = vmatprep.subr.mxu0 %v760
        %1006 = vmatpush1.msra.mxu0 %v758
        %1007 = vmatprep.subr.mxu0 %v768
        %1008 = vmatpush1.msra.mxu0 %v766
        %1009 = vmatprep.subr.mxu0 %v776
        %1010 = vmatpush1.msra.mxu0 %v774
        %1011 = vmatprep.subr.mxu0 %v784
        %1012 = vmatpush1.msra.mxu0 %v782
        %1013 = vmatprep.subr.mxu0 %v792
        %1014 = vmatpush1.msra.mxu0 %v790
        %1015 = vmatprep.subr.mxu0 %v800
        %1016 = vmatpush1.msra.mxu0 %v798
        %1017 = vmatprep.subr.mxu0 %v808
        %1018 = vmatpush1.msra.mxu0 %v806
        %1019 = vmatprep.subr.mxu0 0.0
        %1020 = vmatpush1.msra.mxu0 0.0
        %1021 = vmatprep.subr.mxu0 0.0
        %1022 = vmatpush1.msra.mxu0 0.0
        %1023 = vmatprep.subr.mxu0 0.0
        %1024 = vmatpush1.msra.mxu0 0.0
        %1025 = vmatprep.subr.mxu0 0.0
        %1026 = vmatpush1.msra.mxu0 0.0
        %1027 = vmatprep.subr.mxu0 0.0
        %1028 = vmatpush1.msra.mxu0 0.0
        %1029 = vmatprep.subr.mxu0 0.0
        %1030 = vmatpush1.msra.mxu0 0.0
        %1031 = vmatprep.subr.mxu0 0.0
        %1032 = vmatpush1.msra.mxu0 0.0
        %1033 = vmatprep.subr.mxu0 0.0
        %1034 = vmatpush1.msra.mxu0 0.0
        %1035 = vmatprep.subr.mxu0 0.0
        %1036 = vmatpush1.msra.mxu0 0.0
        %1037 = vmatprep.subr.mxu0 0.0
        %1038 = vmatpush1.msra.mxu0 0.0
        %1039 = vmatprep.subr.mxu0 0.0
        %1040 = vmatpush1.msra.mxu0 0.0
        %1041 = vmatprep.subr.mxu0 0.0
        %1042 = vmatpush1.msra.mxu0 0.0
        %1043 = vmatprep.subr.mxu0 0.0
        %1044 = vmatpush1.msra.mxu0 0.0
        %1045 = vmatprep.subr.mxu0 0.0
        %1046 = vmatpush1.msra.mxu0 0.0
        %1047 = vmatprep.subr.mxu0 0.0
        %1048 = vmatpush1.msra.mxu0 0.0
        %1049 = vmatprep.subr.mxu0 0.0
        %1050 = vmatpush1.msra.mxu0 0.0
        %1051 = vmatprep.subr.mxu0 0.0
        %1052 = vmatpush1.msra.mxu0 0.0
        %1053 = vmatprep.subr.mxu0 0.0
        %1054 = vmatpush1.msra.mxu0 0.0
        %1055 = vmatprep.subr.mxu0 0.0
        %1056 = vmatpush1.msra.mxu0 0.0
        %1057 = vmatprep.subr.mxu0 0.0
        %1058 = vmatpush1.msra.mxu0 0.0
        %1059 = vmatprep.subr.mxu0 0.0
        %1060 = vmatpush1.msra.mxu0 0.0
        %1061 = vmatprep.subr.mxu0 0.0
        %1062 = vmatpush1.msra.mxu0 0.0
        %1063 = vmatprep.subr.mxu0 0.0
        %1064 = vmatpush1.msra.mxu0 0.0
        %1065 = vmatprep.subr.mxu0 0.0
        %1066 = vmatpush1.msra.mxu0 0.0
        %1067 = vmatprep.mubr.f32.mxu0 0.0
        %1068 = vmatmul.mubr.f32.gmra.mrb[0].mxu0 %v867
        %v1069 = vpop.f32.mrb[0].mxu0
        %v1070 = vadd.f32 %v828, %v1069
        %v1071 = vpop.f32.mrb[0].mxu0
        %v1072 = vadd.f32 %v828, %v1071
        %1073 = vmatprep.mubr.f32.mxu0 0.0
        %1074 = vmatmul.mubr.f32.gmra.mrb[0].mxu0 %v870
        %v1075 = vpop.f32.mrb[0].mxu0
        %v1076 = vadd.f32 %v833, %v1075
        %v1077 = vpop.f32.mrb[0].mxu0
        %v1078 = vadd.f32 %v833, %v1077
        %1079 = vmatprep.mubr.f32.mxu0 0.0
        %1080 = vmatmul.mubr.f32.gmra.mrb[0].mxu0 %v873
        %v1081 = vpop.f32.mrb[0].mxu0
        %v1082 = vadd.f32 %v838, %v1081
        %v1083 = vpop.f32.mrb[0].mxu0
        %v1084 = vadd.f32 %v838, %v1083
        %1085 = vmatprep.mubr.f32.mxu0 0.0
        %1086 = vmatmul.mubr.f32.gmra.mrb[0].mxu0 %v876
        %v1087 = vpop.f32.mrb[0].mxu0
        %v1088 = vadd.f32 %v843, %v1087
        %v1089 = vpop.f32.mrb[0].mxu0
        %v1090 = vadd.f32 %v843, %v1089
        %1091 = vmatprep.mubr.f32.mxu0 0.0
        %1092 = vmatmul.mubr.f32.gmra.mrb[0].mxu0 %v879
        %v1093 = vpop.f32.mrb[0].mxu0
        %v1094 = vadd.f32 %v848, %v1093
        %v1095 = vpop.f32.mrb[0].mxu0
        %v1096 = vadd.f32 %v848, %v1095
        %1097 = vmatprep.mubr.f32.mxu0 0.0
        %1098 = vmatmul.mubr.f32.gmra.mrb[0].mxu0 %v882
        %v1099 = vpop.f32.mrb[0].mxu0
        %v1100 = vadd.f32 %v853, %v1099
        %v1101 = vpop.f32.mrb[0].mxu0
        %v1102 = vadd.f32 %v853, %v1101
        %1103 = vmatprep.mubr.f32.mxu0 0.0
        %1104 = vmatmul.mubr.f32.gmra.mrb[0].mxu0 %v885
        %v1105 = vpop.f32.mrb[0].mxu0
        %v1106 = vadd.f32 %v858, %v1105
        %v1107 = vpop.f32.mrb[0].mxu0
        %v1108 = vadd.f32 %v858, %v1107
        %1109 = vmatprep.mubr.f32.mxu0 0.0
        %1110 = vmatmul.mubr.f32.gmra.mrb[0].mxu0 %v888
        %v1111 = vpop.f32.mrb[0].mxu0
        %v1112 = vadd.f32 %v863, %v1111
        %v1113 = vpop.f32.mrb[0].mxu0
        %v1114 = vadd.f32 %v863, %v1113
        %1115 = vdwg.mxu0
        %v1116 = vxor.u32 %v957, 2147483648
        %v1117 = vxor.u32 %v959, 2147483648
        %v1118 = vxor.u32 %v1070, 2147483648
        %v1119 = vxor.u32 %v1072, 2147483648
        %v1120 = vxor.u32 %v963, 2147483648
        %v1121 = vxor.u32 %v965, 2147483648
        %v1122 = vxor.u32 %v1076, 2147483648
        %v1123 = vxor.u32 %v1078, 2147483648
        %v1124 = vxor.u32 %v969, 2147483648
        %v1125 = vxor.u32 %v971, 2147483648
        %v1126 = vxor.u32 %v1082, 2147483648
        %v1127 = vxor.u32 %v1084, 2147483648
        %v1128 = vxor.u32 %v975, 2147483648
        %v1129 = vxor.u32 %v977, 2147483648
        %v1130 = vxor.u32 %v1088, 2147483648
        %v1131 = vxor.u32 %v1090, 2147483648
        %v1132 = vxor.u32 %v981, 2147483648
        %v1133 = vxor.u32 %v983, 2147483648
        %v1134 = vxor.u32 %v1094, 2147483648
        %v1135 = vxor.u32 %v1096, 2147483648
        %v1136 = vxor.u32 %v987, 2147483648
        %v1137 = vxor.u32 %v989, 2147483648
        %v1138 = vxor.u32 %v1100, 2147483648
        %v1139 = vxor.u32 %v1102, 2147483648
        %v1140 = vxor.u32 %v993, 2147483648
        %v1141 = vxor.u32 %v995, 2147483648
        %v1142 = vxor.u32 %v1106, 2147483648
        %v1143 = vxor.u32 %v1108, 2147483648
        %v1144 = vxor.u32 %v999, 2147483648
        %v1145 = vxor.u32 %v1001, 2147483648
        %v1146 = vxor.u32 %v1112, 2147483648
        %v1147 = vxor.u32 %v1114, 2147483648
        %v1148 = vmul.f32 %v1116, 1.442695
        %v1149 = vpow.pop %v1148
        %v1150 = vmul.f32 %v1117, 1.442695
        %v1151 = vpow.pop %v1150
        %v1152 = vmul.f32 %v1118, 1.442695
        %v1153 = vpow.pop %v1152
        %v1154 = vmul.f32 %v1119, 1.442695
        %v1155 = vpow.pop %v1154
        %v1156 = vmul.f32 %v1120, 1.442695
        %v1157 = vpow.pop %v1156
        %v1158 = vmul.f32 %v1121, 1.442695
        %v1159 = vpow.pop %v1158
        %v1160 = vmul.f32 %v1122, 1.442695
        %v1161 = vpow.pop %v1160
        %v1162 = vmul.f32 %v1123, 1.442695
        %v1163 = vpow.pop %v1162
        %v1164 = vmul.f32 %v1124, 1.442695
        %v1165 = vpow.pop %v1164
        %v1166 = vmul.f32 %v1125, 1.442695
        %v1167 = vpow.pop %v1166
        %v1168 = vmul.f32 %v1126, 1.442695
        %v1169 = vpow.pop %v1168
        %v1170 = vmul.f32 %v1127, 1.442695
        %v1171 = vpow.pop %v1170
        %v1172 = vmul.f32 %v1128, 1.442695
        %v1173 = vpow.pop %v1172
        %v1174 = vmul.f32 %v1129, 1.442695
        %v1175 = vpow.pop %v1174
        %v1176 = vmul.f32 %v1130, 1.442695
        %v1177 = vpow.pop %v1176
        %v1178 = vmul.f32 %v1131, 1.442695
        %v1179 = vpow.pop %v1178
        %v1180 = vmul.f32 %v1132, 1.442695
        %v1181 = vpow.pop %v1180
        %v1182 = vmul.f32 %v1133, 1.442695
        %v1183 = vpow.pop %v1182
        %v1184 = vmul.f32 %v1134, 1.442695
        %v1185 = vpow.pop %v1184
        %v1186 = vmul.f32 %v1135, 1.442695
        %v1187 = vpow.pop %v1186
        %v1188 = vmul.f32 %v1136, 1.442695
        %v1189 = vpow.pop %v1188
        %v1190 = vmul.f32 %v1137, 1.442695
        %v1191 = vpow.pop %v1190
        %v1192 = vmul.f32 %v1138, 1.442695
        %v1193 = vpow.pop %v1192
        %v1194 = vmul.f32 %v1139, 1.442695
        %v1195 = vpow.pop %v1194
        %v1196 = vmul.f32 %v1140, 1.442695
        %v1197 = vpow.pop %v1196
        %v1198 = vmul.f32 %v1141, 1.442695
        %v1199 = vpow.pop %v1198
        %v1200 = vmul.f32 %v1142, 1.442695
        %v1201 = vpow.pop %v1200
        %v1202 = vmul.f32 %v1143, 1.442695
        %v1203 = vpow.pop %v1202
        %v1204 = vmul.f32 %v1144, 1.442695
        %v1205 = vpow.pop %v1204
        %v1206 = vmul.f32 %v1145, 1.442695
        %v1207 = vpow.pop %v1206
        %v1208 = vmul.f32 %v1146, 1.442695
        %v1209 = vpow.pop %v1208
        %v1210 = vmul.f32 %v1147, 1.442695
        %v1211 = vpow.pop %v1210
        %v1212 = vadd.f32 %v1149, 1.0
        %v1213 = vadd.f32 %v1151, 1.0
        %v1214 = vadd.f32 %v1153, 1.0
        %v1215 = vadd.f32 %v1155, 1.0
        %v1216 = vadd.f32 %v1157, 1.0
        %v1217 = vadd.f32 %v1159, 1.0
        %v1218 = vadd.f32 %v1161, 1.0
        %v1219 = vadd.f32 %v1163, 1.0
        %v1220 = vadd.f32 %v1165, 1.0
        %v1221 = vadd.f32 %v1167, 1.0
        %v1222 = vadd.f32 %v1169, 1.0
        %v1223 = vadd.f32 %v1171, 1.0
        %v1224 = vadd.f32 %v1173, 1.0
        %v1225 = vadd.f32 %v1175, 1.0
        %v1226 = vadd.f32 %v1177, 1.0
        %v1227 = vadd.f32 %v1179, 1.0
        %v1228 = vadd.f32 %v1181, 1.0
        %v1229 = vadd.f32 %v1183, 1.0
        %v1230 = vadd.f32 %v1185, 1.0
        %v1231 = vadd.f32 %v1187, 1.0
        %v1232 = vadd.f32 %v1189, 1.0
        %v1233 = vadd.f32 %v1191, 1.0
        %v1234 = vadd.f32 %v1193, 1.0
        %v1235 = vadd.f32 %v1195, 1.0
        %v1236 = vadd.f32 %v1197, 1.0
        %v1237 = vadd.f32 %v1199, 1.0
        %v1238 = vadd.f32 %v1201, 1.0
        %v1239 = vadd.f32 %v1203, 1.0
        %v1240 = vadd.f32 %v1205, 1.0
        %v1241 = vadd.f32 %v1207, 1.0
        %v1242 = vadd.f32 %v1209, 1.0
        %v1243 = vadd.f32 %v1211, 1.0
        %v1244 = vrcp.pop %v1212
        %v1245 = vmul.f32 1.0, %v1244
        %v1246 = vrcp.pop %v1213
        %v1247 = vmul.f32 1.0, %v1246
        %v1248 = vrcp.pop %v1214
        %v1249 = vmul.f32 1.0, %v1248
        %v1250 = vrcp.pop %v1215
        %v1251 = vmul.f32 1.0, %v1250
        %v1252 = vrcp.pop %v1216
        %v1253 = vmul.f32 1.0, %v1252
        %v1254 = vrcp.pop %v1217
        %v1255 = vmul.f32 1.0, %v1254
        %v1256 = vrcp.pop %v1218
        %v1257 = vmul.f32 1.0, %v1256
        %v1258 = vrcp.pop %v1219
        %v1259 = vmul.f32 1.0, %v1258
        %v1260 = vrcp.pop %v1220
        %v1261 = vmul.f32 1.0, %v1260
        %v1262 = vrcp.pop %v1221
        %v1263 = vmul.f32 1.0, %v1262
        %v1264 = vrcp.pop %v1222
        %v1265 = vmul.f32 1.0, %v1264
        %v1266 = vrcp.pop %v1223
        %v1267 = vmul.f32 1.0, %v1266
        %v1268 = vrcp.pop %v1224
        %v1269 = vmul.f32 1.0, %v1268
        %v1270 = vrcp.pop %v1225
        %v1271 = vmul.f32 1.0, %v1270
        %v1272 = vrcp.pop %v1226
        %v1273 = vmul.f32 1.0, %v1272
        %v1274 = vrcp.pop %v1227
        %v1275 = vmul.f32 1.0, %v1274
        %v1276 = vrcp.pop %v1228
        %v1277 = vmul.f32 1.0, %v1276
        %v1278 = vrcp.pop %v1229
        %v1279 = vmul.f32 1.0, %v1278
        %v1280 = vrcp.pop %v1230
        %v1281 = vmul.f32 1.0, %v1280
        %v1282 = vrcp.pop %v1231
        %v1283 = vmul.f32 1.0, %v1282
        %v1284 = vrcp.pop %v1232
        %v1285 = vmul.f32 1.0, %v1284
        %v1286 = vrcp.pop %v1233
        %v1287 = vmul.f32 1.0, %v1286
        %v1288 = vrcp.pop %v1234
        %v1289 = vmul.f32 1.0, %v1288
        %v1290 = vrcp.pop %v1235
        %v1291 = vmul.f32 1.0, %v1290
        %v1292 = vrcp.pop %v1236
        %v1293 = vmul.f32 1.0, %v1292
        %v1294 = vrcp.pop %v1237
        %v1295 = vmul.f32 1.0, %v1294
        %v1296 = vrcp.pop %v1238
        %v1297 = vmul.f32 1.0, %v1296
        %v1298 = vrcp.pop %v1239
        %v1299 = vmul.f32 1.0, %v1298
        %v1300 = vrcp.pop %v1240
        %v1301 = vmul.f32 1.0, %v1300
        %v1302 = vrcp.pop %v1241
        %v1303 = vmul.f32 1.0, %v1302
        %v1304 = vrcp.pop %v1242
        %v1305 = vmul.f32 1.0, %v1304
        %v1306 = vrcp.pop %v1243
        %v1307 = vmul.f32 1.0, %v1306
        %s1308 = scalar_lea.vmem %s3, 64
        %v1309 = vld [vmem:[%s1308] sm:$0xff]
        %v1310 = vld [vmem:[%s1308 + $0x8] sm:$0xff]
        %v1311 = vld [vmem:[%s1308 + $0x10] sm:$0xff]
        %v1312 = vld [vmem:[%s1308 + $0x18] sm:$0xff]
        %v1313 = vld [vmem:[%s1308 + $0x20] sm:$0xff]
        %v1314 = vld [vmem:[%s1308 + $0x28] sm:$0xff]
        %v1315 = vld [vmem:[%s1308 + $0x30] sm:$0xff]
        %v1316 = vld [vmem:[%s1308 + $0x38] sm:$0xff]
        %s1317 = scalar_lea.vmem %s4, 64
        %v1318 = vld [vmem:[%s1317] sm:$0xff]
        %v1319 = vld [vmem:[%s1317 + $0x8] sm:$0xff]
        %v1320 = vld [vmem:[%s1317 + $0x10] sm:$0xff]
        %v1321 = vld [vmem:[%s1317 + $0x18] sm:$0xff]
        %v1322 = vld [vmem:[%s1317 + $0x20] sm:$0xff]
        %v1323 = vld [vmem:[%s1317 + $0x28] sm:$0xff]
        %v1324 = vld [vmem:[%s1317 + $0x30] sm:$0xff]
        %v1325 = vld [vmem:[%s1317 + $0x38] sm:$0xff]
        %1327 = vset.pattern.permute.xlu0 0
        %1328 = vperm.xlu0 %1327, %v1318
        %v1329 = vpop.permute.xlu0 %1328
        %1332 = vset.pattern.permute.xlu0 0
        %1333 = vperm.xlu0 %1332, %v1319
        %v1334 = vpop.permute.xlu0 %1333
        %1337 = vset.pattern.permute.xlu0 0
        %1338 = vperm.xlu0 %1337, %v1320
        %v1339 = vpop.permute.xlu0 %1338
        %1342 = vset.pattern.permute.xlu0 0
        %1343 = vperm.xlu0 %1342, %v1321
        %v1344 = vpop.permute.xlu0 %1343
        %1347 = vset.pattern.permute.xlu0 0
        %1348 = vperm.xlu0 %1347, %v1322
        %v1349 = vpop.permute.xlu0 %1348
        %1352 = vset.pattern.permute.xlu0 0
        %1353 = vperm.xlu0 %1352, %v1323
        %v1354 = vpop.permute.xlu0 %1353
        %1357 = vset.pattern.permute.xlu0 0
        %1358 = vperm.xlu0 %1357, %v1324
        %v1359 = vpop.permute.xlu0 %1358
        %1362 = vset.pattern.permute.xlu0 0
        %1363 = vperm.xlu0 %1362, %v1325
        %v1364 = vpop.permute.xlu0 %1363
        %v1367 = vsel %vm865, %v1309, 0
        %v1370 = vsel %vm865, %v1310, 0
        %v1373 = vsel %vm865, %v1311, 0
        %v1376 = vsel %vm865, %v1312, 0
        %v1379 = vsel %vm865, %v1313, 0
        %v1382 = vsel %vm865, %v1314, 0
        %v1385 = vsel %vm865, %v1315, 0
        %v1388 = vsel %vm865, %v1316, 0
        %1390 = vmatprep.subr.mxu0 %v1247
        %1391 = vmatpush1.msra.mxu0 %v1245
        %1392 = vmatprep.subr.mxu0 %v1255
        %1393 = vmatpush1.msra.mxu0 %v1253
        %1394 = vmatprep.subr.mxu0 %v1263
        %1395 = vmatpush1.msra.mxu0 %v1261
        %1396 = vmatprep.subr.mxu0 %v1271
        %1397 = vmatpush1.msra.mxu0 %v1269
        %1398 = vmatprep.subr.mxu0 %v1279
        %1399 = vmatpush1.msra.mxu0 %v1277
        %1400 = vmatprep.subr.mxu0 %v1287
        %1401 = vmatpush1.msra.mxu0 %v1285
        %1402 = vmatprep.subr.mxu0 %v1295
        %1403 = vmatpush1.msra.mxu0 %v1293
        %1404 = vmatprep.subr.mxu0 %v1303
        %1405 = vmatpush1.msra.mxu0 %v1301
        %1406 = vmatprep.subr.mxu0 0.0
        %1407 = vmatpush1.msra.mxu0 0.0
        %1408 = vmatprep.subr.mxu0 0.0
        %1409 = vmatpush1.msra.mxu0 0.0
        %1410 = vmatprep.subr.mxu0 0.0
        %1411 = vmatpush1.msra.mxu0 0.0
        %1412 = vmatprep.subr.mxu0 0.0
        %1413 = vmatpush1.msra.mxu0 0.0
        %1414 = vmatprep.subr.mxu0 0.0
        %1415 = vmatpush1.msra.mxu0 0.0
        %1416 = vmatprep.subr.mxu0 0.0
        %1417 = vmatpush1.msra.mxu0 0.0
        %1418 = vmatprep.subr.mxu0 0.0
        %1419 = vmatpush1.msra.mxu0 0.0
        %1420 = vmatprep.subr.mxu0 0.0
        %1421 = vmatpush1.msra.mxu0 0.0
        %1422 = vmatprep.subr.mxu0 0.0
        %1423 = vmatpush1.msra.mxu0 0.0
        %1424 = vmatprep.subr.mxu0 0.0
        %1425 = vmatpush1.msra.mxu0 0.0
        %1426 = vmatprep.subr.mxu0 0.0
        %1427 = vmatpush1.msra.mxu0 0.0
        %1428 = vmatprep.subr.mxu0 0.0
        %1429 = vmatpush1.msra.mxu0 0.0
        %1430 = vmatprep.subr.mxu0 0.0
        %1431 = vmatpush1.msra.mxu0 0.0
        %1432 = vmatprep.subr.mxu0 0.0
        %1433 = vmatpush1.msra.mxu0 0.0
        %1434 = vmatprep.subr.mxu0 0.0
        %1435 = vmatpush1.msra.mxu0 0.0
        %1436 = vmatprep.subr.mxu0 0.0
        %1437 = vmatpush1.msra.mxu0 0.0
        %1438 = vmatprep.subr.mxu0 0.0
        %1439 = vmatpush1.msra.mxu0 0.0
        %1440 = vmatprep.subr.mxu0 0.0
        %1441 = vmatpush1.msra.mxu0 0.0
        %1442 = vmatprep.subr.mxu0 0.0
        %1443 = vmatpush1.msra.mxu0 0.0
        %1444 = vmatprep.subr.mxu0 0.0
        %1445 = vmatpush1.msra.mxu0 0.0
        %1446 = vmatprep.subr.mxu0 0.0
        %1447 = vmatpush1.msra.mxu0 0.0
        %1448 = vmatprep.subr.mxu0 0.0
        %1449 = vmatpush1.msra.mxu0 0.0
        %1450 = vmatprep.subr.mxu0 0.0
        %1451 = vmatpush1.msra.mxu0 0.0
        %1452 = vmatprep.subr.mxu0 0.0
        %1453 = vmatpush1.msra.mxu0 0.0
        %1454 = vmatprep.mubr.f32.mxu0 0.0
        %1455 = vmatmul.mubr.f32.gmra.mrb[0].mxu0 %v1367
        %v1456 = vpop.f32.mrb[0].mxu0
        %v1457 = vadd.f32 %v1329, %v1456
        %v1458 = vpop.f32.mrb[0].mxu0
        %v1459 = vadd.f32 %v1329, %v1458
        %1460 = vmatprep.mubr.f32.mxu0 0.0
        %1461 = vmatmul.mubr.f32.gmra.mrb[0].mxu0 %v1370
        %v1462 = vpop.f32.mrb[0].mxu0
        %v1463 = vadd.f32 %v1334, %v1462
        %v1464 = vpop.f32.mrb[0].mxu0
        %v1465 = vadd.f32 %v1334, %v1464
        %1466 = vmatprep.mubr.f32.mxu0 0.0
        %1467 = vmatmul.mubr.f32.gmra.mrb[0].mxu0 %v1373
        %v1468 = vpop.f32.mrb[0].mxu0
        %v1469 = vadd.f32 %v1339, %v1468
        %v1470 = vpop.f32.mrb[0].mxu0
        %v1471 = vadd.f32 %v1339, %v1470
        %1472 = vmatprep.mubr.f32.mxu0 0.0
        %1473 = vmatmul.mubr.f32.gmra.mrb[0].mxu0 %v1376
        %v1474 = vpop.f32.mrb[0].mxu0
        %v1475 = vadd.f32 %v1344, %v1474
        %v1476 = vpop.f32.mrb[0].mxu0
        %v1477 = vadd.f32 %v1344, %v1476
        %1478 = vmatprep.mubr.f32.mxu0 0.0
        %1479 = vmatmul.mubr.f32.gmra.mrb[0].mxu0 %v1379
        %v1480 = vpop.f32.mrb[0].mxu0
        %v1481 = vadd.f32 %v1349, %v1480
        %v1482 = vpop.f32.mrb[0].mxu0
        %v1483 = vadd.f32 %v1349, %v1482
        %1484 = vmatprep.mubr.f32.mxu0 0.0
        %1485 = vmatmul.mubr.f32.gmra.mrb[0].mxu0 %v1382
        %v1486 = vpop.f32.mrb[0].mxu0
        %v1487 = vadd.f32 %v1354, %v1486
        %v1488 = vpop.f32.mrb[0].mxu0
        %v1489 = vadd.f32 %v1354, %v1488
        %1490 = vmatprep.mubr.f32.mxu0 0.0
        %1491 = vmatmul.mubr.f32.gmra.mrb[0].mxu0 %v1385
        %v1492 = vpop.f32.mrb[0].mxu0
        %v1493 = vadd.f32 %v1359, %v1492
        %v1494 = vpop.f32.mrb[0].mxu0
        %v1495 = vadd.f32 %v1359, %v1494
        %1496 = vmatprep.mubr.f32.mxu0 0.0
        %1497 = vmatmul.mubr.f32.gmra.mrb[0].mxu0 %v1388
        %v1498 = vpop.f32.mrb[0].mxu0
        %v1499 = vadd.f32 %v1364, %v1498
        %v1500 = vpop.f32.mrb[0].mxu0
        %v1501 = vadd.f32 %v1364, %v1500
        %1502 = vdwg.mxu0
        %1503 = vmatprep.subr.mxu0 %v1251
        %1504 = vmatpush1.msra.mxu0 %v1249
        %1505 = vmatprep.subr.mxu0 %v1259
        %1506 = vmatpush1.msra.mxu0 %v1257
        %1507 = vmatprep.subr.mxu0 %v1267
        %1508 = vmatpush1.msra.mxu0 %v1265
        %1509 = vmatprep.subr.mxu0 %v1275
        %1510 = vmatpush1.msra.mxu0 %v1273
        %1511 = vmatprep.subr.mxu0 %v1283
        %1512 = vmatpush1.msra.mxu0 %v1281
        %1513 = vmatprep.subr.mxu0 %v1291
        %1514 = vmatpush1.msra.mxu0 %v1289
        %1515 = vmatprep.subr.mxu0 %v1299
        %1516 = vmatpush1.msra.mxu0 %v1297
        %1517 = vmatprep.subr.mxu0 %v1307
        %1518 = vmatpush1.msra.mxu0 %v1305
        %1519 = vmatprep.subr.mxu0 0.0
        %1520 = vmatpush1.msra.mxu0 0.0
        %1521 = vmatprep.subr.mxu0 0.0
        %1522 = vmatpush1.msra.mxu0 0.0
        %1523 = vmatprep.subr.mxu0 0.0
        %1524 = vmatpush1.msra.mxu0 0.0
        %1525 = vmatprep.subr.mxu0 0.0
        %1526 = vmatpush1.msra.mxu0 0.0
        %1527 = vmatprep.subr.mxu0 0.0
        %1528 = vmatpush1.msra.mxu0 0.0
        %1529 = vmatprep.subr.mxu0 0.0
        %1530 = vmatpush1.msra.mxu0 0.0
        %1531 = vmatprep.subr.mxu0 0.0
        %1532 = vmatpush1.msra.mxu0 0.0
        %1533 = vmatprep.subr.mxu0 0.0
        %1534 = vmatpush1.msra.mxu0 0.0
        %1535 = vmatprep.subr.mxu0 0.0
        %1536 = vmatpush1.msra.mxu0 0.0
        %1537 = vmatprep.subr.mxu0 0.0
        %1538 = vmatpush1.msra.mxu0 0.0
        %1539 = vmatprep.subr.mxu0 0.0
        %1540 = vmatpush1.msra.mxu0 0.0
        %1541 = vmatprep.subr.mxu0 0.0
        %1542 = vmatpush1.msra.mxu0 0.0
        %1543 = vmatprep.subr.mxu0 0.0
        %1544 = vmatpush1.msra.mxu0 0.0
        %1545 = vmatprep.subr.mxu0 0.0
        %1546 = vmatpush1.msra.mxu0 0.0
        %1547 = vmatprep.subr.mxu0 0.0
        %1548 = vmatpush1.msra.mxu0 0.0
        %1549 = vmatprep.subr.mxu0 0.0
        %1550 = vmatpush1.msra.mxu0 0.0
        %1551 = vmatprep.subr.mxu0 0.0
        %1552 = vmatpush1.msra.mxu0 0.0
        %1553 = vmatprep.subr.mxu0 0.0
        %1554 = vmatpush1.msra.mxu0 0.0
        %1555 = vmatprep.subr.mxu0 0.0
        %1556 = vmatpush1.msra.mxu0 0.0
        %1557 = vmatprep.subr.mxu0 0.0
        %1558 = vmatpush1.msra.mxu0 0.0
        %1559 = vmatprep.subr.mxu0 0.0
        %1560 = vmatpush1.msra.mxu0 0.0
        %1561 = vmatprep.subr.mxu0 0.0
        %1562 = vmatpush1.msra.mxu0 0.0
        %1563 = vmatprep.subr.mxu0 0.0
        %1564 = vmatpush1.msra.mxu0 0.0
        %1565 = vmatprep.subr.mxu0 0.0
        %1566 = vmatpush1.msra.mxu0 0.0
        %1567 = vmatprep.mubr.f32.mxu0 0.0
        %1568 = vmatmul.mubr.f32.gmra.mrb[0].mxu0 %v1367
        %v1569 = vpop.f32.mrb[0].mxu0
        %v1570 = vadd.f32 %v1329, %v1569
        %v1571 = vpop.f32.mrb[0].mxu0
        %v1572 = vadd.f32 %v1329, %v1571
        %1573 = vmatprep.mubr.f32.mxu0 0.0
        %1574 = vmatmul.mubr.f32.gmra.mrb[0].mxu0 %v1370
        %v1575 = vpop.f32.mrb[0].mxu0
        %v1576 = vadd.f32 %v1334, %v1575
        %v1577 = vpop.f32.mrb[0].mxu0
        %v1578 = vadd.f32 %v1334, %v1577
        %1579 = vmatprep.mubr.f32.mxu0 0.0
        %1580 = vmatmul.mubr.f32.gmra.mrb[0].mxu0 %v1373
        %v1581 = vpop.f32.mrb[0].mxu0
        %v1582 = vadd.f32 %v1339, %v1581
        %v1583 = vpop.f32.mrb[0].mxu0
        %v1584 = vadd.f32 %v1339, %v1583
        %1585 = vmatprep.mubr.f32.mxu0 0.0
        %1586 = vmatmul.mubr.f32.gmra.mrb[0].mxu0 %v1376
        %v1587 = vpop.f32.mrb[0].mxu0
        %v1588 = vadd.f32 %v1344, %v1587
        %v1589 = vpop.f32.mrb[0].mxu0
        %v1590 = vadd.f32 %v1344, %v1589
        %1591 = vmatprep.mubr.f32.mxu0 0.0
        %1592 = vmatmul.mubr.f32.gmra.mrb[0].mxu0 %v1379
        %v1593 = vpop.f32.mrb[0].mxu0
        %v1594 = vadd.f32 %v1349, %v1593
        %v1595 = vpop.f32.mrb[0].mxu0
        %v1596 = vadd.f32 %v1349, %v1595
        %1597 = vmatprep.mubr.f32.mxu0 0.0
        %1598 = vmatmul.mubr.f32.gmra.mrb[0].mxu0 %v1382
        %v1599 = vpop.f32.mrb[0].mxu0
        %v1600 = vadd.f32 %v1354, %v1599
        %v1601 = vpop.f32.mrb[0].mxu0
        %v1602 = vadd.f32 %v1354, %v1601
        %1603 = vmatprep.mubr.f32.mxu0 0.0
        %1604 = vmatmul.mubr.f32.gmra.mrb[0].mxu0 %v1385
        %v1605 = vpop.f32.mrb[0].mxu0
        %v1606 = vadd.f32 %v1359, %v1605
        %v1607 = vpop.f32.mrb[0].mxu0
        %v1608 = vadd.f32 %v1359, %v1607
        %1609 = vmatprep.mubr.f32.mxu0 0.0
        %1610 = vmatmul.mubr.f32.gmra.mrb[0].mxu0 %v1388
        %v1611 = vpop.f32.mrb[0].mxu0
        %v1612 = vadd.f32 %v1364, %v1611
        %v1613 = vpop.f32.mrb[0].mxu0
        %v1614 = vadd.f32 %v1364, %v1613
        %1615 = vdwg.mxu0
        %v1616 = vxor.u32 %v1457, 2147483648
        %v1617 = vxor.u32 %v1459, 2147483648
        %v1618 = vxor.u32 %v1570, 2147483648
        %v1619 = vxor.u32 %v1572, 2147483648
        %v1620 = vxor.u32 %v1463, 2147483648
        %v1621 = vxor.u32 %v1465, 2147483648
        %v1622 = vxor.u32 %v1576, 2147483648
        %v1623 = vxor.u32 %v1578, 2147483648
        %v1624 = vxor.u32 %v1469, 2147483648
        %v1625 = vxor.u32 %v1471, 2147483648
        %v1626 = vxor.u32 %v1582, 2147483648
        %v1627 = vxor.u32 %v1584, 2147483648
        %v1628 = vxor.u32 %v1475, 2147483648
        %v1629 = vxor.u32 %v1477, 2147483648
        %v1630 = vxor.u32 %v1588, 2147483648
        %v1631 = vxor.u32 %v1590, 2147483648
        %v1632 = vxor.u32 %v1481, 2147483648
        %v1633 = vxor.u32 %v1483, 2147483648
        %v1634 = vxor.u32 %v1594, 2147483648
        %v1635 = vxor.u32 %v1596, 2147483648
        %v1636 = vxor.u32 %v1487, 2147483648
        %v1637 = vxor.u32 %v1489, 2147483648
        %v1638 = vxor.u32 %v1600, 2147483648
        %v1639 = vxor.u32 %v1602, 2147483648
        %v1640 = vxor.u32 %v1493, 2147483648
        %v1641 = vxor.u32 %v1495, 2147483648
        %v1642 = vxor.u32 %v1606, 2147483648
        %v1643 = vxor.u32 %v1608, 2147483648
        %v1644 = vxor.u32 %v1499, 2147483648
        %v1645 = vxor.u32 %v1501, 2147483648
        %v1646 = vxor.u32 %v1612, 2147483648
        %v1647 = vxor.u32 %v1614, 2147483648
        %v1648 = vmul.f32 %v1616, 1.442695
        %v1649 = vpow.pop %v1648
        %v1650 = vmul.f32 %v1617, 1.442695
        %v1651 = vpow.pop %v1650
        %v1652 = vmul.f32 %v1618, 1.442695
        %v1653 = vpow.pop %v1652
        %v1654 = vmul.f32 %v1619, 1.442695
        %v1655 = vpow.pop %v1654
        %v1656 = vmul.f32 %v1620, 1.442695
        %v1657 = vpow.pop %v1656
        %v1658 = vmul.f32 %v1621, 1.442695
        %v1659 = vpow.pop %v1658
        %v1660 = vmul.f32 %v1622, 1.442695
        %v1661 = vpow.pop %v1660
        %v1662 = vmul.f32 %v1623, 1.442695
        %v1663 = vpow.pop %v1662
        %v1664 = vmul.f32 %v1624, 1.442695
        %v1665 = vpow.pop %v1664
        %v1666 = vmul.f32 %v1625, 1.442695
        %v1667 = vpow.pop %v1666
        %v1668 = vmul.f32 %v1626, 1.442695
        %v1669 = vpow.pop %v1668
        %v1670 = vmul.f32 %v1627, 1.442695
        %v1671 = vpow.pop %v1670
        %v1672 = vmul.f32 %v1628, 1.442695
        %v1673 = vpow.pop %v1672
        %v1674 = vmul.f32 %v1629, 1.442695
        %v1675 = vpow.pop %v1674
        %v1676 = vmul.f32 %v1630, 1.442695
        %v1677 = vpow.pop %v1676
        %v1678 = vmul.f32 %v1631, 1.442695
        %v1679 = vpow.pop %v1678
        %v1680 = vmul.f32 %v1632, 1.442695
        %v1681 = vpow.pop %v1680
        %v1682 = vmul.f32 %v1633, 1.442695
        %v1683 = vpow.pop %v1682
        %v1684 = vmul.f32 %v1634, 1.442695
        %v1685 = vpow.pop %v1684
        %v1686 = vmul.f32 %v1635, 1.442695
        %v1687 = vpow.pop %v1686
        %v1688 = vmul.f32 %v1636, 1.442695
        %v1689 = vpow.pop %v1688
        %v1690 = vmul.f32 %v1637, 1.442695
        %v1691 = vpow.pop %v1690
        %v1692 = vmul.f32 %v1638, 1.442695
        %v1693 = vpow.pop %v1692
        %v1694 = vmul.f32 %v1639, 1.442695
        %v1695 = vpow.pop %v1694
        %v1696 = vmul.f32 %v1640, 1.442695
        %v1697 = vpow.pop %v1696
        %v1698 = vmul.f32 %v1641, 1.442695
        %v1699 = vpow.pop %v1698
        %v1700 = vmul.f32 %v1642, 1.442695
        %v1701 = vpow.pop %v1700
        %v1702 = vmul.f32 %v1643, 1.442695
        %v1703 = vpow.pop %v1702
        %v1704 = vmul.f32 %v1644, 1.442695
        %v1705 = vpow.pop %v1704
        %v1706 = vmul.f32 %v1645, 1.442695
        %v1707 = vpow.pop %v1706
        %v1708 = vmul.f32 %v1646, 1.442695
        %v1709 = vpow.pop %v1708
        %v1710 = vmul.f32 %v1647, 1.442695
        %v1711 = vpow.pop %v1710
        %v1712 = vadd.f32 %v1649, 1.0
        %v1713 = vadd.f32 %v1651, 1.0
        %v1714 = vadd.f32 %v1653, 1.0
        %v1715 = vadd.f32 %v1655, 1.0
        %v1716 = vadd.f32 %v1657, 1.0
        %v1717 = vadd.f32 %v1659, 1.0
        %v1718 = vadd.f32 %v1661, 1.0
        %v1719 = vadd.f32 %v1663, 1.0
        %v1720 = vadd.f32 %v1665, 1.0
        %v1721 = vadd.f32 %v1667, 1.0
        %v1722 = vadd.f32 %v1669, 1.0
        %v1723 = vadd.f32 %v1671, 1.0
        %v1724 = vadd.f32 %v1673, 1.0
        %v1725 = vadd.f32 %v1675, 1.0
        %v1726 = vadd.f32 %v1677, 1.0
        %v1727 = vadd.f32 %v1679, 1.0
        %v1728 = vadd.f32 %v1681, 1.0
        %v1729 = vadd.f32 %v1683, 1.0
        %v1730 = vadd.f32 %v1685, 1.0
        %v1731 = vadd.f32 %v1687, 1.0
        %v1732 = vadd.f32 %v1689, 1.0
        %v1733 = vadd.f32 %v1691, 1.0
        %v1734 = vadd.f32 %v1693, 1.0
        %v1735 = vadd.f32 %v1695, 1.0
        %v1736 = vadd.f32 %v1697, 1.0
        %v1737 = vadd.f32 %v1699, 1.0
        %v1738 = vadd.f32 %v1701, 1.0
        %v1739 = vadd.f32 %v1703, 1.0
        %v1740 = vadd.f32 %v1705, 1.0
        %v1741 = vadd.f32 %v1707, 1.0
        %v1742 = vadd.f32 %v1709, 1.0
        %v1743 = vadd.f32 %v1711, 1.0
        %v1744 = vrcp.pop %v1712
        %v1745 = vmul.f32 1.0, %v1744
        %v1746 = vrcp.pop %v1713
        %v1747 = vmul.f32 1.0, %v1746
        %v1748 = vrcp.pop %v1714
        %v1749 = vmul.f32 1.0, %v1748
        %v1750 = vrcp.pop %v1715
        %v1751 = vmul.f32 1.0, %v1750
        %v1752 = vrcp.pop %v1716
        %v1753 = vmul.f32 1.0, %v1752
        %v1754 = vrcp.pop %v1717
        %v1755 = vmul.f32 1.0, %v1754
        %v1756 = vrcp.pop %v1718
        %v1757 = vmul.f32 1.0, %v1756
        %v1758 = vrcp.pop %v1719
        %v1759 = vmul.f32 1.0, %v1758
        %v1760 = vrcp.pop %v1720
        %v1761 = vmul.f32 1.0, %v1760
        %v1762 = vrcp.pop %v1721
        %v1763 = vmul.f32 1.0, %v1762
        %v1764 = vrcp.pop %v1722
        %v1765 = vmul.f32 1.0, %v1764
        %v1766 = vrcp.pop %v1723
        %v1767 = vmul.f32 1.0, %v1766
        %v1768 = vrcp.pop %v1724
        %v1769 = vmul.f32 1.0, %v1768
        %v1770 = vrcp.pop %v1725
        %v1771 = vmul.f32 1.0, %v1770
        %v1772 = vrcp.pop %v1726
        %v1773 = vmul.f32 1.0, %v1772
        %v1774 = vrcp.pop %v1727
        %v1775 = vmul.f32 1.0, %v1774
        %v1776 = vrcp.pop %v1728
        %v1777 = vmul.f32 1.0, %v1776
        %v1778 = vrcp.pop %v1729
        %v1779 = vmul.f32 1.0, %v1778
        %v1780 = vrcp.pop %v1730
        %v1781 = vmul.f32 1.0, %v1780
        %v1782 = vrcp.pop %v1731
        %v1783 = vmul.f32 1.0, %v1782
        %v1784 = vrcp.pop %v1732
        %v1785 = vmul.f32 1.0, %v1784
        %v1786 = vrcp.pop %v1733
        %v1787 = vmul.f32 1.0, %v1786
        %v1788 = vrcp.pop %v1734
        %v1789 = vmul.f32 1.0, %v1788
        %v1790 = vrcp.pop %v1735
        %v1791 = vmul.f32 1.0, %v1790
        %v1792 = vrcp.pop %v1736
        %v1793 = vmul.f32 1.0, %v1792
        %v1794 = vrcp.pop %v1737
        %v1795 = vmul.f32 1.0, %v1794
        %v1796 = vrcp.pop %v1738
        %v1797 = vmul.f32 1.0, %v1796
        %v1798 = vrcp.pop %v1739
        %v1799 = vmul.f32 1.0, %v1798
        %v1800 = vrcp.pop %v1740
        %v1801 = vmul.f32 1.0, %v1800
        %v1802 = vrcp.pop %v1741
        %v1803 = vmul.f32 1.0, %v1802
        %v1804 = vrcp.pop %v1742
        %v1805 = vmul.f32 1.0, %v1804
        %v1806 = vrcp.pop %v1743
        %v1807 = vmul.f32 1.0, %v1806
        %v1808 = vadd.f32 %v1745, %v746
        %v1809 = vadd.f32 %v1747, %v748
        %v1810 = vadd.f32 %v1749, %v750
        %v1811 = vadd.f32 %v1751, %v752
        %v1812 = vadd.f32 %v1753, %v754
        %v1813 = vadd.f32 %v1755, %v756
        %v1814 = vadd.f32 %v1757, %v758
        %v1815 = vadd.f32 %v1759, %v760
        %v1816 = vadd.f32 %v1761, %v762
        %v1817 = vadd.f32 %v1763, %v764
        %v1818 = vadd.f32 %v1765, %v766
        %v1819 = vadd.f32 %v1767, %v768
        %v1820 = vadd.f32 %v1769, %v770
        %v1821 = vadd.f32 %v1771, %v772
        %v1822 = vadd.f32 %v1773, %v774
        %v1823 = vadd.f32 %v1775, %v776
        %v1824 = vadd.f32 %v1777, %v778
        %v1825 = vadd.f32 %v1779, %v780
        %v1826 = vadd.f32 %v1781, %v782
        %v1827 = vadd.f32 %v1783, %v784
        %v1828 = vadd.f32 %v1785, %v786
        %v1829 = vadd.f32 %v1787, %v788
        %v1830 = vadd.f32 %v1789, %v790
        %v1831 = vadd.f32 %v1791, %v792
        %v1832 = vadd.f32 %v1793, %v794
        %v1833 = vadd.f32 %v1795, %v796
        %v1834 = vadd.f32 %v1797, %v798
        %v1835 = vadd.f32 %v1799, %v800
        %v1836 = vadd.f32 %v1801, %v802
        %v1837 = vadd.f32 %v1803, %v804
        %v1838 = vadd.f32 %v1805, %v806
        %v1839 = vadd.f32 %v1807, %v808
        %s1840 = scalar_lea.vmem %s3, 128
        %v1841 = vld [vmem:[%s1840] sm:$0xff]
        %v1842 = vld [vmem:[%s1840 + $0x8] sm:$0xff]
        %v1843 = vld [vmem:[%s1840 + $0x10] sm:$0xff]
        %v1844 = vld [vmem:[%s1840 + $0x18] sm:$0xff]
        %v1845 = vld [vmem:[%s1840 + $0x20] sm:$0xff]
        %v1846 = vld [vmem:[%s1840 + $0x28] sm:$0xff]
        %v1847 = vld [vmem:[%s1840 + $0x30] sm:$0xff]
        %v1848 = vld [vmem:[%s1840 + $0x38] sm:$0xff]
        %s1849 = scalar_lea.vmem %s4, 128
        %v1850 = vld [vmem:[%s1849] sm:$0xff]
        %v1851 = vld [vmem:[%s1849 + $0x8] sm:$0xff]
        %v1852 = vld [vmem:[%s1849 + $0x10] sm:$0xff]
        %v1853 = vld [vmem:[%s1849 + $0x18] sm:$0xff]
        %v1854 = vld [vmem:[%s1849 + $0x20] sm:$0xff]
        %v1855 = vld [vmem:[%s1849 + $0x28] sm:$0xff]
        %v1856 = vld [vmem:[%s1849 + $0x30] sm:$0xff]
        %v1857 = vld [vmem:[%s1849 + $0x38] sm:$0xff]
        %1859 = vset.pattern.permute.xlu0 0
        %1860 = vperm.xlu0 %1859, %v1850
        %v1861 = vpop.permute.xlu0 %1860
        %1864 = vset.pattern.permute.xlu0 0
        %1865 = vperm.xlu0 %1864, %v1851
        %v1866 = vpop.permute.xlu0 %1865
        %1869 = vset.pattern.permute.xlu0 0
        %1870 = vperm.xlu0 %1869, %v1852
        %v1871 = vpop.permute.xlu0 %1870
        %1874 = vset.pattern.permute.xlu0 0
        %1875 = vperm.xlu0 %1874, %v1853
        %v1876 = vpop.permute.xlu0 %1875
        %1879 = vset.pattern.permute.xlu0 0
        %1880 = vperm.xlu0 %1879, %v1854
        %v1881 = vpop.permute.xlu0 %1880
        %1884 = vset.pattern.permute.xlu0 0
        %1885 = vperm.xlu0 %1884, %v1855
        %v1886 = vpop.permute.xlu0 %1885
        %1889 = vset.pattern.permute.xlu0 0
        %1890 = vperm.xlu0 %1889, %v1856
        %v1891 = vpop.permute.xlu0 %1890
        %1894 = vset.pattern.permute.xlu0 0
        %1895 = vperm.xlu0 %1894, %v1857
        %v1896 = vpop.permute.xlu0 %1895
        %v1899 = vsel %vm865, %v1841, 0
        %v1902 = vsel %vm865, %v1842, 0
        %v1905 = vsel %vm865, %v1843, 0
        %v1908 = vsel %vm865, %v1844, 0
        %v1911 = vsel %vm865, %v1845, 0
        %v1914 = vsel %vm865, %v1846, 0
        %v1917 = vsel %vm865, %v1847, 0
        %v1920 = vsel %vm865, %v1848, 0
        %1922 = vmatprep.subr.mxu0 %v1809
        %1923 = vmatpush1.msra.mxu0 %v1808
        %1924 = vmatprep.subr.mxu0 %v1813
        %1925 = vmatpush1.msra.mxu0 %v1812
        %1926 = vmatprep.subr.mxu0 %v1817
        %1927 = vmatpush1.msra.mxu0 %v1816
        %1928 = vmatprep.subr.mxu0 %v1821
        %1929 = vmatpush1.msra.mxu0 %v1820
        %1930 = vmatprep.subr.mxu0 %v1825
        %1931 = vmatpush1.msra.mxu0 %v1824
        %1932 = vmatprep.subr.mxu0 %v1829
        %1933 = vmatpush1.msra.mxu0 %v1828
        %1934 = vmatprep.subr.mxu0 %v1833
        %1935 = vmatpush1.msra.mxu0 %v1832
        %1936 = vmatprep.subr.mxu0 %v1837
        %1937 = vmatpush1.msra.mxu0 %v1836
        %1938 = vmatprep.subr.mxu0 0.0
        %1939 = vmatpush1.msra.mxu0 0.0
        %1940 = vmatprep.subr.mxu0 0.0
        %1941 = vmatpush1.msra.mxu0 0.0
        %1942 = vmatprep.subr.mxu0 0.0
        %1943 = vmatpush1.msra.mxu0 0.0
        %1944 = vmatprep.subr.mxu0 0.0
        %1945 = vmatpush1.msra.mxu0 0.0
        %1946 = vmatprep.subr.mxu0 0.0
        %1947 = vmatpush1.msra.mxu0 0.0
        %1948 = vmatprep.subr.mxu0 0.0
        %1949 = vmatpush1.msra.mxu0 0.0
        %1950 = vmatprep.subr.mxu0 0.0
        %1951 = vmatpush1.msra.mxu0 0.0
        %1952 = vmatprep.subr.mxu0 0.0
        %1953 = vmatpush1.msra.mxu0 0.0
        %1954 = vmatprep.subr.mxu0 0.0
        %1955 = vmatpush1.msra.mxu0 0.0
        %1956 = vmatprep.subr.mxu0 0.0
        %1957 = vmatpush1.msra.mxu0 0.0
        %1958 = vmatprep.subr.mxu0 0.0
        %1959 = vmatpush1.msra.mxu0 0.0
        %1960 = vmatprep.subr.mxu0 0.0
        %1961 = vmatpush1.msra.mxu0 0.0
        %1962 = vmatprep.subr.mxu0 0.0
        %1963 = vmatpush1.msra.mxu0 0.0
        %1964 = vmatprep.subr.mxu0 0.0
        %1965 = vmatpush1.msra.mxu0 0.0
        %1966 = vmatprep.subr.mxu0 0.0
        %1967 = vmatpush1.msra.mxu0 0.0
        %1968 = vmatprep.subr.mxu0 0.0
        %1969 = vmatpush1.msra.mxu0 0.0
        %1970 = vmatprep.subr.mxu0 0.0
        %1971 = vmatpush1.msra.mxu0 0.0
        %1972 = vmatprep.subr.mxu0 0.0
        %1973 = vmatpush1.msra.mxu0 0.0
        %1974 = vmatprep.subr.mxu0 0.0
        %1975 = vmatpush1.msra.mxu0 0.0
        %1976 = vmatprep.subr.mxu0 0.0
        %1977 = vmatpush1.msra.mxu0 0.0
        %1978 = vmatprep.subr.mxu0 0.0
        %1979 = vmatpush1.msra.mxu0 0.0
        %1980 = vmatprep.subr.mxu0 0.0
        %1981 = vmatpush1.msra.mxu0 0.0
        %1982 = vmatprep.subr.mxu0 0.0
        %1983 = vmatpush1.msra.mxu0 0.0
        %1984 = vmatprep.subr.mxu0 0.0
        %1985 = vmatpush1.msra.mxu0 0.0
        %1986 = vmatprep.mubr.f32.mxu0 0.0
        %1987 = vmatmul.mubr.f32.gmra.mrb[0].mxu0 %v1899
        %v1988 = vpop.f32.mrb[0].mxu0
        %v1989 = vadd.f32 %v1861, %v1988
        %v1990 = vpop.f32.mrb[0].mxu0
        %v1991 = vadd.f32 %v1861, %v1990
        %1992 = vmatprep.mubr.f32.mxu0 0.0
        %1993 = vmatmul.mubr.f32.gmra.mrb[0].mxu0 %v1902
        %v1994 = vpop.f32.mrb[0].mxu0
        %v1995 = vadd.f32 %v1866, %v1994
        %v1996 = vpop.f32.mrb[0].mxu0
        %v1997 = vadd.f32 %v1866, %v1996
        %1998 = vmatprep.mubr.f32.mxu0 0.0
        %1999 = vmatmul.mubr.f32.gmra.mrb[0].mxu0 %v1905
        %v2000 = vpop.f32.mrb[0].mxu0
        %v2001 = vadd.f32 %v1871, %v2000
        %v2002 = vpop.f32.mrb[0].mxu0
        %v2003 = vadd.f32 %v1871, %v2002
        %2004 = vmatprep.mubr.f32.mxu0 0.0
        %2005 = vmatmul.mubr.f32.gmra.mrb[0].mxu0 %v1908
        %v2006 = vpop.f32.mrb[0].mxu0
        %v2007 = vadd.f32 %v1876, %v2006
        %v2008 = vpop.f32.mrb[0].mxu0
        %v2009 = vadd.f32 %v1876, %v2008
        %2010 = vmatprep.mubr.f32.mxu0 0.0
        %2011 = vmatmul.mubr.f32.gmra.mrb[0].mxu0 %v1911
        %v2012 = vpop.f32.mrb[0].mxu0
        %v2013 = vadd.f32 %v1881, %v2012
        %v2014 = vpop.f32.mrb[0].mxu0
        %v2015 = vadd.f32 %v1881, %v2014
        %2016 = vmatprep.mubr.f32.mxu0 0.0
        %2017 = vmatmul.mubr.f32.gmra.mrb[0].mxu0 %v1914
        %v2018 = vpop.f32.mrb[0].mxu0
        %v2019 = vadd.f32 %v1886, %v2018
        %v2020 = vpop.f32.mrb[0].mxu0
        %v2021 = vadd.f32 %v1886, %v2020
        %2022 = vmatprep.mubr.f32.mxu0 0.0
        %2023 = vmatmul.mubr.f32.gmra.mrb[0].mxu0 %v1917
        %v2024 = vpop.f32.mrb[0].mxu0
        %v2025 = vadd.f32 %v1891, %v2024
        %v2026 = vpop.f32.mrb[0].mxu0
        %v2027 = vadd.f32 %v1891, %v2026
        %2028 = vmatprep.mubr.f32.mxu0 0.0
        %2029 = vmatmul.mubr.f32.gmra.mrb[0].mxu0 %v1920
        %v2030 = vpop.f32.mrb[0].mxu0
        %v2031 = vadd.f32 %v1896, %v2030
        %v2032 = vpop.f32.mrb[0].mxu0
        %v2033 = vadd.f32 %v1896, %v2032
        %2034 = vdwg.mxu0
        %2035 = vmatprep.subr.mxu0 %v1811
        %2036 = vmatpush1.msra.mxu0 %v1810
        %2037 = vmatprep.subr.mxu0 %v1815
        %2038 = vmatpush1.msra.mxu0 %v1814
        %2039 = vmatprep.subr.mxu0 %v1819
        %2040 = vmatpush1.msra.mxu0 %v1818
        %2041 = vmatprep.subr.mxu0 %v1823
        %2042 = vmatpush1.msra.mxu0 %v1822
        %2043 = vmatprep.subr.mxu0 %v1827
        %2044 = vmatpush1.msra.mxu0 %v1826
        %2045 = vmatprep.subr.mxu0 %v1831
        %2046 = vmatpush1.msra.mxu0 %v1830
        %2047 = vmatprep.subr.mxu0 %v1835
        %2048 = vmatpush1.msra.mxu0 %v1834
        %2049 = vmatprep.subr.mxu0 %v1839
        %2050 = vmatpush1.msra.mxu0 %v1838
        %2051 = vmatprep.subr.mxu0 0.0
        %2052 = vmatpush1.msra.mxu0 0.0
        %2053 = vmatprep.subr.mxu0 0.0
        %2054 = vmatpush1.msra.mxu0 0.0
        %2055 = vmatprep.subr.mxu0 0.0
        %2056 = vmatpush1.msra.mxu0 0.0
        %2057 = vmatprep.subr.mxu0 0.0
        %2058 = vmatpush1.msra.mxu0 0.0
        %2059 = vmatprep.subr.mxu0 0.0
        %2060 = vmatpush1.msra.mxu0 0.0
        %2061 = vmatprep.subr.mxu0 0.0
        %2062 = vmatpush1.msra.mxu0 0.0
        %2063 = vmatprep.subr.mxu0 0.0
        %2064 = vmatpush1.msra.mxu0 0.0
        %2065 = vmatprep.subr.mxu0 0.0
        %2066 = vmatpush1.msra.mxu0 0.0
        %2067 = vmatprep.subr.mxu0 0.0
        %2068 = vmatpush1.msra.mxu0 0.0
        %2069 = vmatprep.subr.mxu0 0.0
        %2070 = vmatpush1.msra.mxu0 0.0
        %2071 = vmatprep.subr.mxu0 0.0
        %2072 = vmatpush1.msra.mxu0 0.0
        %2073 = vmatprep.subr.mxu0 0.0
        %2074 = vmatpush1.msra.mxu0 0.0
        %2075 = vmatprep.subr.mxu0 0.0
        %2076 = vmatpush1.msra.mxu0 0.0
        %2077 = vmatprep.subr.mxu0 0.0
        %2078 = vmatpush1.msra.mxu0 0.0
        %2079 = vmatprep.subr.mxu0 0.0
        %2080 = vmatpush1.msra.mxu0 0.0
        %2081 = vmatprep.subr.mxu0 0.0
        %2082 = vmatpush1.msra.mxu0 0.0
        %2083 = vmatprep.subr.mxu0 0.0
        %2084 = vmatpush1.msra.mxu0 0.0
        %2085 = vmatprep.subr.mxu0 0.0
        %2086 = vmatpush1.msra.mxu0 0.0
        %2087 = vmatprep.subr.mxu0 0.0
        %2088 = vmatpush1.msra.mxu0 0.0
        %2089 = vmatprep.subr.mxu0 0.0
        %2090 = vmatpush1.msra.mxu0 0.0
        %2091 = vmatprep.subr.mxu0 0.0
        %2092 = vmatpush1.msra.mxu0 0.0
        %2093 = vmatprep.subr.mxu0 0.0
        %2094 = vmatpush1.msra.mxu0 0.0
        %2095 = vmatprep.subr.mxu0 0.0
        %2096 = vmatpush1.msra.mxu0 0.0
        %2097 = vmatprep.subr.mxu0 0.0
        %2098 = vmatpush1.msra.mxu0 0.0
        %2099 = vmatprep.mubr.f32.mxu0 0.0
        %2100 = vmatmul.mubr.f32.gmra.mrb[0].mxu0 %v1899
        %v2101 = vpop.f32.mrb[0].mxu0
        %v2102 = vadd.f32 %v1861, %v2101
        %v2103 = vpop.f32.mrb[0].mxu0
        %v2104 = vadd.f32 %v1861, %v2103
        %2105 = vmatprep.mubr.f32.mxu0 0.0
        %2106 = vmatmul.mubr.f32.gmra.mrb[0].mxu0 %v1902
        %v2107 = vpop.f32.mrb[0].mxu0
        %v2108 = vadd.f32 %v1866, %v2107
        %v2109 = vpop.f32.mrb[0].mxu0
        %v2110 = vadd.f32 %v1866, %v2109
        %2111 = vmatprep.mubr.f32.mxu0 0.0
        %2112 = vmatmul.mubr.f32.gmra.mrb[0].mxu0 %v1905
        %v2113 = vpop.f32.mrb[0].mxu0
        %v2114 = vadd.f32 %v1871, %v2113
        %v2115 = vpop.f32.mrb[0].mxu0
        %v2116 = vadd.f32 %v1871, %v2115
        %2117 = vmatprep.mubr.f32.mxu0 0.0
        %2118 = vmatmul.mubr.f32.gmra.mrb[0].mxu0 %v1908
        %v2119 = vpop.f32.mrb[0].mxu0
        %v2120 = vadd.f32 %v1876, %v2119
        %v2121 = vpop.f32.mrb[0].mxu0
        %v2122 = vadd.f32 %v1876, %v2121
        %2123 = vmatprep.mubr.f32.mxu0 0.0
        %2124 = vmatmul.mubr.f32.gmra.mrb[0].mxu0 %v1911
        %v2125 = vpop.f32.mrb[0].mxu0
        %v2126 = vadd.f32 %v1881, %v2125
        %v2127 = vpop.f32.mrb[0].mxu0
        %v2128 = vadd.f32 %v1881, %v2127
        %2129 = vmatprep.mubr.f32.mxu0 0.0
        %2130 = vmatmul.mubr.f32.gmra.mrb[0].mxu0 %v1914
        %v2131 = vpop.f32.mrb[0].mxu0
        %v2132 = vadd.f32 %v1886, %v2131
        %v2133 = vpop.f32.mrb[0].mxu0
        %v2134 = vadd.f32 %v1886, %v2133
        %2135 = vmatprep.mubr.f32.mxu0 0.0
        %2136 = vmatmul.mubr.f32.gmra.mrb[0].mxu0 %v1917
        %v2137 = vpop.f32.mrb[0].mxu0
        %v2138 = vadd.f32 %v1891, %v2137
        %v2139 = vpop.f32.mrb[0].mxu0
        %v2140 = vadd.f32 %v1891, %v2139
        %2141 = vmatprep.mubr.f32.mxu0 0.0
        %2142 = vmatmul.mubr.f32.gmra.mrb[0].mxu0 %v1920
        %v2143 = vpop.f32.mrb[0].mxu0
        %v2144 = vadd.f32 %v1896, %v2143
        %v2145 = vpop.f32.mrb[0].mxu0
        %v2146 = vadd.f32 %v1896, %v2145
        %2147 = vdwg.mxu0
        %v2148 = vxor.u32 %v1989, 2147483648
        %v2149 = vxor.u32 %v1991, 2147483648
        %v2150 = vxor.u32 %v2102, 2147483648
        %v2151 = vxor.u32 %v2104, 2147483648
        %v2152 = vxor.u32 %v1995, 2147483648
        %v2153 = vxor.u32 %v1997, 2147483648
        %v2154 = vxor.u32 %v2108, 2147483648
        %v2155 = vxor.u32 %v2110, 2147483648
        %v2156 = vxor.u32 %v2001, 2147483648
        %v2157 = vxor.u32 %v2003, 2147483648
        %v2158 = vxor.u32 %v2114, 2147483648
        %v2159 = vxor.u32 %v2116, 2147483648
        %v2160 = vxor.u32 %v2007, 2147483648
        %v2161 = vxor.u32 %v2009, 2147483648
        %v2162 = vxor.u32 %v2120, 2147483648
        %v2163 = vxor.u32 %v2122, 2147483648
        %v2164 = vxor.u32 %v2013, 2147483648
        %v2165 = vxor.u32 %v2015, 2147483648
        %v2166 = vxor.u32 %v2126, 2147483648
        %v2167 = vxor.u32 %v2128, 2147483648
        %v2168 = vxor.u32 %v2019, 2147483648
        %v2169 = vxor.u32 %v2021, 2147483648
        %v2170 = vxor.u32 %v2132, 2147483648
        %v2171 = vxor.u32 %v2134, 2147483648
        %v2172 = vxor.u32 %v2025, 2147483648
        %v2173 = vxor.u32 %v2027, 2147483648
        %v2174 = vxor.u32 %v2138, 2147483648
        %v2175 = vxor.u32 %v2140, 2147483648
        %v2176 = vxor.u32 %v2031, 2147483648
        %v2177 = vxor.u32 %v2033, 2147483648
        %v2178 = vxor.u32 %v2144, 2147483648
        %v2179 = vxor.u32 %v2146, 2147483648
        %v2180 = vmul.f32 %v2148, 1.442695
        %v2181 = vpow.pop %v2180
        %v2182 = vmul.f32 %v2149, 1.442695
        %v2183 = vpow.pop %v2182
        %v2184 = vmul.f32 %v2150, 1.442695
        %v2185 = vpow.pop %v2184
        %v2186 = vmul.f32 %v2151, 1.442695
        %v2187 = vpow.pop %v2186
        %v2188 = vmul.f32 %v2152, 1.442695
        %v2189 = vpow.pop %v2188
        %v2190 = vmul.f32 %v2153, 1.442695
        %v2191 = vpow.pop %v2190
        %v2192 = vmul.f32 %v2154, 1.442695
        %v2193 = vpow.pop %v2192
        %v2194 = vmul.f32 %v2155, 1.442695
        %v2195 = vpow.pop %v2194
        %v2196 = vmul.f32 %v2156, 1.442695
        %v2197 = vpow.pop %v2196
        %v2198 = vmul.f32 %v2157, 1.442695
        %v2199 = vpow.pop %v2198
        %v2200 = vmul.f32 %v2158, 1.442695
        %v2201 = vpow.pop %v2200
        %v2202 = vmul.f32 %v2159, 1.442695
        %v2203 = vpow.pop %v2202
        %v2204 = vmul.f32 %v2160, 1.442695
        %v2205 = vpow.pop %v2204
        %v2206 = vmul.f32 %v2161, 1.442695
        %v2207 = vpow.pop %v2206
        %v2208 = vmul.f32 %v2162, 1.442695
        %v2209 = vpow.pop %v2208
        %v2210 = vmul.f32 %v2163, 1.442695
        %v2211 = vpow.pop %v2210
        %v2212 = vmul.f32 %v2164, 1.442695
        %v2213 = vpow.pop %v2212
        %v2214 = vmul.f32 %v2165, 1.442695
        %v2215 = vpow.pop %v2214
        %v2216 = vmul.f32 %v2166, 1.442695
        %v2217 = vpow.pop %v2216
        %v2218 = vmul.f32 %v2167, 1.442695
        %v2219 = vpow.pop %v2218
        %v2220 = vmul.f32 %v2168, 1.442695
        %v2221 = vpow.pop %v2220
        %v2222 = vmul.f32 %v2169, 1.442695
        %v2223 = vpow.pop %v2222
        %v2224 = vmul.f32 %v2170, 1.442695
        %v2225 = vpow.pop %v2224
        %v2226 = vmul.f32 %v2171, 1.442695
        %v2227 = vpow.pop %v2226
        %v2228 = vmul.f32 %v2172, 1.442695
        %v2229 = vpow.pop %v2228
        %v2230 = vmul.f32 %v2173, 1.442695
        %v2231 = vpow.pop %v2230
        %v2232 = vmul.f32 %v2174, 1.442695
        %v2233 = vpow.pop %v2232
        %v2234 = vmul.f32 %v2175, 1.442695
        %v2235 = vpow.pop %v2234
        %v2236 = vmul.f32 %v2176, 1.442695
        %v2237 = vpow.pop %v2236
        %v2238 = vmul.f32 %v2177, 1.442695
        %v2239 = vpow.pop %v2238
        %v2240 = vmul.f32 %v2178, 1.442695
        %v2241 = vpow.pop %v2240
        %v2242 = vmul.f32 %v2179, 1.442695
        %v2243 = vpow.pop %v2242
        %v2244 = vadd.f32 %v2181, 1.0
        %v2245 = vadd.f32 %v2183, 1.0
        %v2246 = vadd.f32 %v2185, 1.0
        %v2247 = vadd.f32 %v2187, 1.0
        %v2248 = vadd.f32 %v2189, 1.0
        %v2249 = vadd.f32 %v2191, 1.0
        %v2250 = vadd.f32 %v2193, 1.0
        %v2251 = vadd.f32 %v2195, 1.0
        %v2252 = vadd.f32 %v2197, 1.0
        %v2253 = vadd.f32 %v2199, 1.0
        %v2254 = vadd.f32 %v2201, 1.0
        %v2255 = vadd.f32 %v2203, 1.0
        %v2256 = vadd.f32 %v2205, 1.0
        %v2257 = vadd.f32 %v2207, 1.0
        %v2258 = vadd.f32 %v2209, 1.0
        %v2259 = vadd.f32 %v2211, 1.0
        %v2260 = vadd.f32 %v2213, 1.0
        %v2261 = vadd.f32 %v2215, 1.0
        %v2262 = vadd.f32 %v2217, 1.0
        %v2263 = vadd.f32 %v2219, 1.0
        %v2264 = vadd.f32 %v2221, 1.0
        %v2265 = vadd.f32 %v2223, 1.0
        %v2266 = vadd.f32 %v2225, 1.0
        %v2267 = vadd.f32 %v2227, 1.0
        %v2268 = vadd.f32 %v2229, 1.0
        %v2269 = vadd.f32 %v2231, 1.0
        %v2270 = vadd.f32 %v2233, 1.0
        %v2271 = vadd.f32 %v2235, 1.0
        %v2272 = vadd.f32 %v2237, 1.0
        %v2273 = vadd.f32 %v2239, 1.0
        %v2274 = vadd.f32 %v2241, 1.0
        %v2275 = vadd.f32 %v2243, 1.0
        %v2276 = vrcp.pop %v2244
        %v2277 = vmul.f32 1.0, %v2276
        %v2278 = vrcp.pop %v2245
        %v2279 = vmul.f32 1.0, %v2278
        %v2280 = vrcp.pop %v2246
        %v2281 = vmul.f32 1.0, %v2280
        %v2282 = vrcp.pop %v2247
        %v2283 = vmul.f32 1.0, %v2282
        %v2284 = vrcp.pop %v2248
        %v2285 = vmul.f32 1.0, %v2284
        %v2286 = vrcp.pop %v2249
        %v2287 = vmul.f32 1.0, %v2286
        %v2288 = vrcp.pop %v2250
        %v2289 = vmul.f32 1.0, %v2288
        %v2290 = vrcp.pop %v2251
        %v2291 = vmul.f32 1.0, %v2290
        %v2292 = vrcp.pop %v2252
        %v2293 = vmul.f32 1.0, %v2292
        %v2294 = vrcp.pop %v2253
        %v2295 = vmul.f32 1.0, %v2294
        %v2296 = vrcp.pop %v2254
        %v2297 = vmul.f32 1.0, %v2296
        %v2298 = vrcp.pop %v2255
        %v2299 = vmul.f32 1.0, %v2298
        %v2300 = vrcp.pop %v2256
        %v2301 = vmul.f32 1.0, %v2300
        %v2302 = vrcp.pop %v2257
        %v2303 = vmul.f32 1.0, %v2302
        %v2304 = vrcp.pop %v2258
        %v2305 = vmul.f32 1.0, %v2304
        %v2306 = vrcp.pop %v2259
        %v2307 = vmul.f32 1.0, %v2306
        %v2308 = vrcp.pop %v2260
        %v2309 = vmul.f32 1.0, %v2308
        %v2310 = vrcp.pop %v2261
        %v2311 = vmul.f32 1.0, %v2310
        %v2312 = vrcp.pop %v2262
        %v2313 = vmul.f32 1.0, %v2312
        %v2314 = vrcp.pop %v2263
        %v2315 = vmul.f32 1.0, %v2314
        %v2316 = vrcp.pop %v2264
        %v2317 = vmul.f32 1.0, %v2316
        %v2318 = vrcp.pop %v2265
        %v2319 = vmul.f32 1.0, %v2318
        %v2320 = vrcp.pop %v2266
        %v2321 = vmul.f32 1.0, %v2320
        %v2322 = vrcp.pop %v2267
        %v2323 = vmul.f32 1.0, %v2322
        %v2324 = vrcp.pop %v2268
        %v2325 = vmul.f32 1.0, %v2324
        %v2326 = vrcp.pop %v2269
        %v2327 = vmul.f32 1.0, %v2326
        %v2328 = vrcp.pop %v2270
        %v2329 = vmul.f32 1.0, %v2328
        %v2330 = vrcp.pop %v2271
        %v2331 = vmul.f32 1.0, %v2330
        %v2332 = vrcp.pop %v2272
        %v2333 = vmul.f32 1.0, %v2332
        %v2334 = vrcp.pop %v2273
        %v2335 = vmul.f32 1.0, %v2334
        %v2336 = vrcp.pop %v2274
        %v2337 = vmul.f32 1.0, %v2336
        %v2338 = vrcp.pop %v2275
        %v2339 = vmul.f32 1.0, %v2338
        %s2340 = scalar_lea.vmem %s3, 192
        %v2341 = vld [vmem:[%s2340] sm:$0xff]
        %v2342 = vld [vmem:[%s2340 + $0x8] sm:$0xff]
        %v2343 = vld [vmem:[%s2340 + $0x10] sm:$0xff]
        %v2344 = vld [vmem:[%s2340 + $0x18] sm:$0xff]
        %v2345 = vld [vmem:[%s2340 + $0x20] sm:$0xff]
        %v2346 = vld [vmem:[%s2340 + $0x28] sm:$0xff]
        %v2347 = vld [vmem:[%s2340 + $0x30] sm:$0xff]
        %v2348 = vld [vmem:[%s2340 + $0x38] sm:$0xff]
        %s2349 = scalar_lea.vmem %s4, 192
        %v2350 = vld [vmem:[%s2349] sm:$0xff]
        %v2351 = vld [vmem:[%s2349 + $0x8] sm:$0xff]
        %v2352 = vld [vmem:[%s2349 + $0x10] sm:$0xff]
        %v2353 = vld [vmem:[%s2349 + $0x18] sm:$0xff]
        %v2354 = vld [vmem:[%s2349 + $0x20] sm:$0xff]
        %v2355 = vld [vmem:[%s2349 + $0x28] sm:$0xff]
        %v2356 = vld [vmem:[%s2349 + $0x30] sm:$0xff]
        %v2357 = vld [vmem:[%s2349 + $0x38] sm:$0xff]
        %2359 = vset.pattern.permute.xlu0 0
        %2360 = vperm.xlu0 %2359, %v2350
        %v2361 = vpop.permute.xlu0 %2360
        %2364 = vset.pattern.permute.xlu0 0
        %2365 = vperm.xlu0 %2364, %v2351
        %v2366 = vpop.permute.xlu0 %2365
        %2369 = vset.pattern.permute.xlu0 0
        %2370 = vperm.xlu0 %2369, %v2352
        %v2371 = vpop.permute.xlu0 %2370
        %2374 = vset.pattern.permute.xlu0 0
        %2375 = vperm.xlu0 %2374, %v2353
        %v2376 = vpop.permute.xlu0 %2375
        %2379 = vset.pattern.permute.xlu0 0
        %2380 = vperm.xlu0 %2379, %v2354
        %v2381 = vpop.permute.xlu0 %2380
        %2384 = vset.pattern.permute.xlu0 0
        %2385 = vperm.xlu0 %2384, %v2355
        %v2386 = vpop.permute.xlu0 %2385
        %2389 = vset.pattern.permute.xlu0 0
        %2390 = vperm.xlu0 %2389, %v2356
        %v2391 = vpop.permute.xlu0 %2390
        %2394 = vset.pattern.permute.xlu0 0
        %2395 = vperm.xlu0 %2394, %v2357
        %v2396 = vpop.permute.xlu0 %2395
        %v2399 = vsel %vm865, %v2341, 0
        %v2402 = vsel %vm865, %v2342, 0
        %v2405 = vsel %vm865, %v2343, 0
        %v2408 = vsel %vm865, %v2344, 0
        %v2411 = vsel %vm865, %v2345, 0
        %v2414 = vsel %vm865, %v2346, 0
        %v2417 = vsel %vm865, %v2347, 0
        %v2420 = vsel %vm865, %v2348, 0
        %2422 = vmatprep.subr.mxu0 %v2279
        %2423 = vmatpush1.msra.mxu0 %v2277
        %2424 = vmatprep.subr.mxu0 %v2287
        %2425 = vmatpush1.msra.mxu0 %v2285
        %2426 = vmatprep.subr.mxu0 %v2295
        %2427 = vmatpush1.msra.mxu0 %v2293
        %2428 = vmatprep.subr.mxu0 %v2303
        %2429 = vmatpush1.msra.mxu0 %v2301
        %2430 = vmatprep.subr.mxu0 %v2311
        %2431 = vmatpush1.msra.mxu0 %v2309
        %2432 = vmatprep.subr.mxu0 %v2319
        %2433 = vmatpush1.msra.mxu0 %v2317
        %2434 = vmatprep.subr.mxu0 %v2327
        %2435 = vmatpush1.msra.mxu0 %v2325
        %2436 = vmatprep.subr.mxu0 %v2335
        %2437 = vmatpush1.msra.mxu0 %v2333
        %2438 = vmatprep.subr.mxu0 0.0
        %2439 = vmatpush1.msra.mxu0 0.0
        %2440 = vmatprep.subr.mxu0 0.0
        %2441 = vmatpush1.msra.mxu0 0.0
        %2442 = vmatprep.subr.mxu0 0.0
        %2443 = vmatpush1.msra.mxu0 0.0
        %2444 = vmatprep.subr.mxu0 0.0
        %2445 = vmatpush1.msra.mxu0 0.0
        %2446 = vmatprep.subr.mxu0 0.0
        %2447 = vmatpush1.msra.mxu0 0.0
        %2448 = vmatprep.subr.mxu0 0.0
        %2449 = vmatpush1.msra.mxu0 0.0
        %2450 = vmatprep.subr.mxu0 0.0
        %2451 = vmatpush1.msra.mxu0 0.0
        %2452 = vmatprep.subr.mxu0 0.0
        %2453 = vmatpush1.msra.mxu0 0.0
        %2454 = vmatprep.subr.mxu0 0.0
        %2455 = vmatpush1.msra.mxu0 0.0
        %2456 = vmatprep.subr.mxu0 0.0
        %2457 = vmatpush1.msra.mxu0 0.0
        %2458 = vmatprep.subr.mxu0 0.0
        %2459 = vmatpush1.msra.mxu0 0.0
        %2460 = vmatprep.subr.mxu0 0.0
        %2461 = vmatpush1.msra.mxu0 0.0
        %2462 = vmatprep.subr.mxu0 0.0
        %2463 = vmatpush1.msra.mxu0 0.0
        %2464 = vmatprep.subr.mxu0 0.0
        %2465 = vmatpush1.msra.mxu0 0.0
        %2466 = vmatprep.subr.mxu0 0.0
        %2467 = vmatpush1.msra.mxu0 0.0
        %2468 = vmatprep.subr.mxu0 0.0
        %2469 = vmatpush1.msra.mxu0 0.0
        %2470 = vmatprep.subr.mxu0 0.0
        %2471 = vmatpush1.msra.mxu0 0.0
        %2472 = vmatprep.subr.mxu0 0.0
        %2473 = vmatpush1.msra.mxu0 0.0
        %2474 = vmatprep.subr.mxu0 0.0
        %2475 = vmatpush1.msra.mxu0 0.0
        %2476 = vmatprep.subr.mxu0 0.0
        %2477 = vmatpush1.msra.mxu0 0.0
        %2478 = vmatprep.subr.mxu0 0.0
        %2479 = vmatpush1.msra.mxu0 0.0
        %2480 = vmatprep.subr.mxu0 0.0
        %2481 = vmatpush1.msra.mxu0 0.0
        %2482 = vmatprep.subr.mxu0 0.0
        %2483 = vmatpush1.msra.mxu0 0.0
        %2484 = vmatprep.subr.mxu0 0.0
        %2485 = vmatpush1.msra.mxu0 0.0
        %2486 = vmatprep.mubr.f32.mxu0 0.0
        %2487 = vmatmul.mubr.f32.gmra.mrb[0].mxu0 %v2399
        %v2488 = vpop.f32.mrb[0].mxu0
        %v2489 = vadd.f32 %v2361, %v2488
        %v2490 = vpop.f32.mrb[0].mxu0
        %v2491 = vadd.f32 %v2361, %v2490
        %2492 = vmatprep.mubr.f32.mxu0 0.0
        %2493 = vmatmul.mubr.f32.gmra.mrb[0].mxu0 %v2402
        %v2494 = vpop.f32.mrb[0].mxu0
        %v2495 = vadd.f32 %v2366, %v2494
        %v2496 = vpop.f32.mrb[0].mxu0
        %v2497 = vadd.f32 %v2366, %v2496
        %2498 = vmatprep.mubr.f32.mxu0 0.0
        %2499 = vmatmul.mubr.f32.gmra.mrb[0].mxu0 %v2405
        %v2500 = vpop.f32.mrb[0].mxu0
        %v2501 = vadd.f32 %v2371, %v2500
        %v2502 = vpop.f32.mrb[0].mxu0
        %v2503 = vadd.f32 %v2371, %v2502
        %2504 = vmatprep.mubr.f32.mxu0 0.0
        %2505 = vmatmul.mubr.f32.gmra.mrb[0].mxu0 %v2408
        %v2506 = vpop.f32.mrb[0].mxu0
        %v2507 = vadd.f32 %v2376, %v2506
        %v2508 = vpop.f32.mrb[0].mxu0
        %v2509 = vadd.f32 %v2376, %v2508
        %2510 = vmatprep.mubr.f32.mxu0 0.0
        %2511 = vmatmul.mubr.f32.gmra.mrb[0].mxu0 %v2411
        %v2512 = vpop.f32.mrb[0].mxu0
        %v2513 = vadd.f32 %v2381, %v2512
        %v2514 = vpop.f32.mrb[0].mxu0
        %v2515 = vadd.f32 %v2381, %v2514
        %2516 = vmatprep.mubr.f32.mxu0 0.0
        %2517 = vmatmul.mubr.f32.gmra.mrb[0].mxu0 %v2414
        %v2518 = vpop.f32.mrb[0].mxu0
        %v2519 = vadd.f32 %v2386, %v2518
        %v2520 = vpop.f32.mrb[0].mxu0
        %v2521 = vadd.f32 %v2386, %v2520
        %2522 = vmatprep.mubr.f32.mxu0 0.0
        %2523 = vmatmul.mubr.f32.gmra.mrb[0].mxu0 %v2417
        %v2524 = vpop.f32.mrb[0].mxu0
        %v2525 = vadd.f32 %v2391, %v2524
        %v2526 = vpop.f32.mrb[0].mxu0
        %v2527 = vadd.f32 %v2391, %v2526
        %2528 = vmatprep.mubr.f32.mxu0 0.0
        %2529 = vmatmul.mubr.f32.gmra.mrb[0].mxu0 %v2420
        %v2530 = vpop.f32.mrb[0].mxu0
        %v2531 = vadd.f32 %v2396, %v2530
        %v2532 = vpop.f32.mrb[0].mxu0
        %v2533 = vadd.f32 %v2396, %v2532
        %2534 = vdwg.mxu0
        %2535 = vmatprep.subr.mxu0 %v2283
        %2536 = vmatpush1.msra.mxu0 %v2281
        %2537 = vmatprep.subr.mxu0 %v2291
        %2538 = vmatpush1.msra.mxu0 %v2289
        %2539 = vmatprep.subr.mxu0 %v2299
        %2540 = vmatpush1.msra.mxu0 %v2297
        %2541 = vmatprep.subr.mxu0 %v2307
        %2542 = vmatpush1.msra.mxu0 %v2305
        %2543 = vmatprep.subr.mxu0 %v2315
        %2544 = vmatpush1.msra.mxu0 %v2313
        %2545 = vmatprep.subr.mxu0 %v2323
        %2546 = vmatpush1.msra.mxu0 %v2321
        %2547 = vmatprep.subr.mxu0 %v2331
        %2548 = vmatpush1.msra.mxu0 %v2329
        %2549 = vmatprep.subr.mxu0 %v2339
        %2550 = vmatpush1.msra.mxu0 %v2337
        %2551 = vmatprep.subr.mxu0 0.0
        %2552 = vmatpush1.msra.mxu0 0.0
        %2553 = vmatprep.subr.mxu0 0.0
        %2554 = vmatpush1.msra.mxu0 0.0
        %2555 = vmatprep.subr.mxu0 0.0
        %2556 = vmatpush1.msra.mxu0 0.0
        %2557 = vmatprep.subr.mxu0 0.0
        %2558 = vmatpush1.msra.mxu0 0.0
        %2559 = vmatprep.subr.mxu0 0.0
        %2560 = vmatpush1.msra.mxu0 0.0
        %2561 = vmatprep.subr.mxu0 0.0
        %2562 = vmatpush1.msra.mxu0 0.0
        %2563 = vmatprep.subr.mxu0 0.0
        %2564 = vmatpush1.msra.mxu0 0.0
        %2565 = vmatprep.subr.mxu0 0.0
        %2566 = vmatpush1.msra.mxu0 0.0
        %2567 = vmatprep.subr.mxu0 0.0
        %2568 = vmatpush1.msra.mxu0 0.0
        %2569 = vmatprep.subr.mxu0 0.0
        %2570 = vmatpush1.msra.mxu0 0.0
        %2571 = vmatprep.subr.mxu0 0.0
        %2572 = vmatpush1.msra.mxu0 0.0
        %2573 = vmatprep.subr.mxu0 0.0
        %2574 = vmatpush1.msra.mxu0 0.0
        %2575 = vmatprep.subr.mxu0 0.0
        %2576 = vmatpush1.msra.mxu0 0.0
        %2577 = vmatprep.subr.mxu0 0.0
        %2578 = vmatpush1.msra.mxu0 0.0
        %2579 = vmatprep.subr.mxu0 0.0
        %2580 = vmatpush1.msra.mxu0 0.0
        %2581 = vmatprep.subr.mxu0 0.0
        %2582 = vmatpush1.msra.mxu0 0.0
        %2583 = vmatprep.subr.mxu0 0.0
        %2584 = vmatpush1.msra.mxu0 0.0
        %2585 = vmatprep.subr.mxu0 0.0
        %2586 = vmatpush1.msra.mxu0 0.0
        %2587 = vmatprep.subr.mxu0 0.0
        %2588 = vmatpush1.msra.mxu0 0.0
        %2589 = vmatprep.subr.mxu0 0.0
        %2590 = vmatpush1.msra.mxu0 0.0
        %2591 = vmatprep.subr.mxu0 0.0
        %2592 = vmatpush1.msra.mxu0 0.0
        %2593 = vmatprep.subr.mxu0 0.0
        %2594 = vmatpush1.msra.mxu0 0.0
        %2595 = vmatprep.subr.mxu0 0.0
        %2596 = vmatpush1.msra.mxu0 0.0
        %2597 = vmatprep.subr.mxu0 0.0
        %2598 = vmatpush1.msra.mxu0 0.0
        %2599 = vmatprep.mubr.f32.mxu0 0.0
        %2600 = vmatmul.mubr.f32.gmra.mrb[0].mxu0 %v2399
        %v2601 = vpop.f32.mrb[0].mxu0
        %v2602 = vadd.f32 %v2361, %v2601
        %v2603 = vpop.f32.mrb[0].mxu0
        %v2604 = vadd.f32 %v2361, %v2603
        %2605 = vmatprep.mubr.f32.mxu0 0.0
        %2606 = vmatmul.mubr.f32.gmra.mrb[0].mxu0 %v2402
        %v2607 = vpop.f32.mrb[0].mxu0
        %v2608 = vadd.f32 %v2366, %v2607
        %v2609 = vpop.f32.mrb[0].mxu0
        %v2610 = vadd.f32 %v2366, %v2609
        %2611 = vmatprep.mubr.f32.mxu0 0.0
        %2612 = vmatmul.mubr.f32.gmra.mrb[0].mxu0 %v2405
        %v2613 = vpop.f32.mrb[0].mxu0
        %v2614 = vadd.f32 %v2371, %v2613
        %v2615 = vpop.f32.mrb[0].mxu0
        %v2616 = vadd.f32 %v2371, %v2615
        %2617 = vmatprep.mubr.f32.mxu0 0.0
        %2618 = vmatmul.mubr.f32.gmra.mrb[0].mxu0 %v2408
        %v2619 = vpop.f32.mrb[0].mxu0
        %v2620 = vadd.f32 %v2376, %v2619
        %v2621 = vpop.f32.mrb[0].mxu0
        %v2622 = vadd.f32 %v2376, %v2621
        %2623 = vmatprep.mubr.f32.mxu0 0.0
        %2624 = vmatmul.mubr.f32.gmra.mrb[0].mxu0 %v2411
        %v2625 = vpop.f32.mrb[0].mxu0
        %v2626 = vadd.f32 %v2381, %v2625
        %v2627 = vpop.f32.mrb[0].mxu0
        %v2628 = vadd.f32 %v2381, %v2627
        %2629 = vmatprep.mubr.f32.mxu0 0.0
        %2630 = vmatmul.mubr.f32.gmra.mrb[0].mxu0 %v2414
        %v2631 = vpop.f32.mrb[0].mxu0
        %v2632 = vadd.f32 %v2386, %v2631
        %v2633 = vpop.f32.mrb[0].mxu0
        %v2634 = vadd.f32 %v2386, %v2633
        %2635 = vmatprep.mubr.f32.mxu0 0.0
        %2636 = vmatmul.mubr.f32.gmra.mrb[0].mxu0 %v2417
        %v2637 = vpop.f32.mrb[0].mxu0
        %v2638 = vadd.f32 %v2391, %v2637
        %v2639 = vpop.f32.mrb[0].mxu0
        %v2640 = vadd.f32 %v2391, %v2639
        %2641 = vmatprep.mubr.f32.mxu0 0.0
        %2642 = vmatmul.mubr.f32.gmra.mrb[0].mxu0 %v2420
        %v2643 = vpop.f32.mrb[0].mxu0
        %v2644 = vadd.f32 %v2396, %v2643
        %v2645 = vpop.f32.mrb[0].mxu0
        %v2646 = vadd.f32 %v2396, %v2645
        %2647 = vdwg.mxu0
        %v2648 = vxor.u32 %v2489, 2147483648
        %v2649 = vxor.u32 %v2491, 2147483648
        %v2650 = vxor.u32 %v2602, 2147483648
        %v2651 = vxor.u32 %v2604, 2147483648
        %v2652 = vxor.u32 %v2495, 2147483648
        %v2653 = vxor.u32 %v2497, 2147483648
        %v2654 = vxor.u32 %v2608, 2147483648
        %v2655 = vxor.u32 %v2610, 2147483648
        %v2656 = vxor.u32 %v2501, 2147483648
        %v2657 = vxor.u32 %v2503, 2147483648
        %v2658 = vxor.u32 %v2614, 2147483648
        %v2659 = vxor.u32 %v2616, 2147483648
        %v2660 = vxor.u32 %v2507, 2147483648
        %v2661 = vxor.u32 %v2509, 2147483648
        %v2662 = vxor.u32 %v2620, 2147483648
        %v2663 = vxor.u32 %v2622, 2147483648
        %v2664 = vxor.u32 %v2513, 2147483648
        %v2665 = vxor.u32 %v2515, 2147483648
        %v2666 = vxor.u32 %v2626, 2147483648
        %v2667 = vxor.u32 %v2628, 2147483648
        %v2668 = vxor.u32 %v2519, 2147483648
        %v2669 = vxor.u32 %v2521, 2147483648
        %v2670 = vxor.u32 %v2632, 2147483648
        %v2671 = vxor.u32 %v2634, 2147483648
        %v2672 = vxor.u32 %v2525, 2147483648
        %v2673 = vxor.u32 %v2527, 2147483648
        %v2674 = vxor.u32 %v2638, 2147483648
        %v2675 = vxor.u32 %v2640, 2147483648
        %v2676 = vxor.u32 %v2531, 2147483648
        %v2677 = vxor.u32 %v2533, 2147483648
        %v2678 = vxor.u32 %v2644, 2147483648
        %v2679 = vxor.u32 %v2646, 2147483648
        %v2680 = vmul.f32 %v2648, 1.442695
        %v2681 = vpow.pop %v2680
        %v2682 = vmul.f32 %v2649, 1.442695
        %v2683 = vpow.pop %v2682
        %v2684 = vmul.f32 %v2650, 1.442695
        %v2685 = vpow.pop %v2684
        %v2686 = vmul.f32 %v2651, 1.442695
        %v2687 = vpow.pop %v2686
        %v2688 = vmul.f32 %v2652, 1.442695
        %v2689 = vpow.pop %v2688
        %v2690 = vmul.f32 %v2653, 1.442695
        %v2691 = vpow.pop %v2690
        %v2692 = vmul.f32 %v2654, 1.442695
        %v2693 = vpow.pop %v2692
        %v2694 = vmul.f32 %v2655, 1.442695
        %v2695 = vpow.pop %v2694
        %v2696 = vmul.f32 %v2656, 1.442695
        %v2697 = vpow.pop %v2696
        %v2698 = vmul.f32 %v2657, 1.442695
        %v2699 = vpow.pop %v2698
        %v2700 = vmul.f32 %v2658, 1.442695
        %v2701 = vpow.pop %v2700
        %v2702 = vmul.f32 %v2659, 1.442695
        %v2703 = vpow.pop %v2702
        %v2704 = vmul.f32 %v2660, 1.442695
        %v2705 = vpow.pop %v2704
        %v2706 = vmul.f32 %v2661, 1.442695
        %v2707 = vpow.pop %v2706
        %v2708 = vmul.f32 %v2662, 1.442695
        %v2709 = vpow.pop %v2708
        %v2710 = vmul.f32 %v2663, 1.442695
        %v2711 = vpow.pop %v2710
        %v2712 = vmul.f32 %v2664, 1.442695
        %v2713 = vpow.pop %v2712
        %v2714 = vmul.f32 %v2665, 1.442695
        %v2715 = vpow.pop %v2714
        %v2716 = vmul.f32 %v2666, 1.442695
        %v2717 = vpow.pop %v2716
        %v2718 = vmul.f32 %v2667, 1.442695
        %v2719 = vpow.pop %v2718
        %v2720 = vmul.f32 %v2668, 1.442695
        %v2721 = vpow.pop %v2720
        %v2722 = vmul.f32 %v2669, 1.442695
        %v2723 = vpow.pop %v2722
        %v2724 = vmul.f32 %v2670, 1.442695
        %v2725 = vpow.pop %v2724
        %v2726 = vmul.f32 %v2671, 1.442695
        %v2727 = vpow.pop %v2726
        %v2728 = vmul.f32 %v2672, 1.442695
        %v2729 = vpow.pop %v2728
        %v2730 = vmul.f32 %v2673, 1.442695
        %v2731 = vpow.pop %v2730
        %v2732 = vmul.f32 %v2674, 1.442695
        %v2733 = vpow.pop %v2732
        %v2734 = vmul.f32 %v2675, 1.442695
        %v2735 = vpow.pop %v2734
        %v2736 = vmul.f32 %v2676, 1.442695
        %v2737 = vpow.pop %v2736
        %v2738 = vmul.f32 %v2677, 1.442695
        %v2739 = vpow.pop %v2738
        %v2740 = vmul.f32 %v2678, 1.442695
        %v2741 = vpow.pop %v2740
        %v2742 = vmul.f32 %v2679, 1.442695
        %v2743 = vpow.pop %v2742
        %v2744 = vadd.f32 %v2681, 1.0
        %v2745 = vadd.f32 %v2683, 1.0
        %v2746 = vadd.f32 %v2685, 1.0
        %v2747 = vadd.f32 %v2687, 1.0
        %v2748 = vadd.f32 %v2689, 1.0
        %v2749 = vadd.f32 %v2691, 1.0
        %v2750 = vadd.f32 %v2693, 1.0
        %v2751 = vadd.f32 %v2695, 1.0
        %v2752 = vadd.f32 %v2697, 1.0
        %v2753 = vadd.f32 %v2699, 1.0
        %v2754 = vadd.f32 %v2701, 1.0
        %v2755 = vadd.f32 %v2703, 1.0
        %v2756 = vadd.f32 %v2705, 1.0
        %v2757 = vadd.f32 %v2707, 1.0
        %v2758 = vadd.f32 %v2709, 1.0
        %v2759 = vadd.f32 %v2711, 1.0
        %v2760 = vadd.f32 %v2713, 1.0
        %v2761 = vadd.f32 %v2715, 1.0
        %v2762 = vadd.f32 %v2717, 1.0
        %v2763 = vadd.f32 %v2719, 1.0
        %v2764 = vadd.f32 %v2721, 1.0
        %v2765 = vadd.f32 %v2723, 1.0
        %v2766 = vadd.f32 %v2725, 1.0
        %v2767 = vadd.f32 %v2727, 1.0
        %v2768 = vadd.f32 %v2729, 1.0
        %v2769 = vadd.f32 %v2731, 1.0
        %v2770 = vadd.f32 %v2733, 1.0
        %v2771 = vadd.f32 %v2735, 1.0
        %v2772 = vadd.f32 %v2737, 1.0
        %v2773 = vadd.f32 %v2739, 1.0
        %v2774 = vadd.f32 %v2741, 1.0
        %v2775 = vadd.f32 %v2743, 1.0
        %v2776 = vrcp.pop %v2744
        %v2777 = vmul.f32 1.0, %v2776
        %v2778 = vrcp.pop %v2745
        %v2779 = vmul.f32 1.0, %v2778
        %v2780 = vrcp.pop %v2746
        %v2781 = vmul.f32 1.0, %v2780
        %v2782 = vrcp.pop %v2747
        %v2783 = vmul.f32 1.0, %v2782
        %v2784 = vrcp.pop %v2748
        %v2785 = vmul.f32 1.0, %v2784
        %v2786 = vrcp.pop %v2749
        %v2787 = vmul.f32 1.0, %v2786
        %v2788 = vrcp.pop %v2750
        %v2789 = vmul.f32 1.0, %v2788
        %v2790 = vrcp.pop %v2751
        %v2791 = vmul.f32 1.0, %v2790
        %v2792 = vrcp.pop %v2752
        %v2793 = vmul.f32 1.0, %v2792
        %v2794 = vrcp.pop %v2753
        %v2795 = vmul.f32 1.0, %v2794
        %v2796 = vrcp.pop %v2754
        %v2797 = vmul.f32 1.0, %v2796
        %v2798 = vrcp.pop %v2755
        %v2799 = vmul.f32 1.0, %v2798
        %v2800 = vrcp.pop %v2756
        %v2801 = vmul.f32 1.0, %v2800
        %v2802 = vrcp.pop %v2757
        %v2803 = vmul.f32 1.0, %v2802
        %v2804 = vrcp.pop %v2758
        %v2805 = vmul.f32 1.0, %v2804
        %v2806 = vrcp.pop %v2759
        %v2807 = vmul.f32 1.0, %v2806
        %v2808 = vrcp.pop %v2760
        %v2809 = vmul.f32 1.0, %v2808
        %v2810 = vrcp.pop %v2761
        %v2811 = vmul.f32 1.0, %v2810
        %v2812 = vrcp.pop %v2762
        %v2813 = vmul.f32 1.0, %v2812
        %v2814 = vrcp.pop %v2763
        %v2815 = vmul.f32 1.0, %v2814
        %v2816 = vrcp.pop %v2764
        %v2817 = vmul.f32 1.0, %v2816
        %v2818 = vrcp.pop %v2765
        %v2819 = vmul.f32 1.0, %v2818
        %v2820 = vrcp.pop %v2766
        %v2821 = vmul.f32 1.0, %v2820
        %v2822 = vrcp.pop %v2767
        %v2823 = vmul.f32 1.0, %v2822
        %v2824 = vrcp.pop %v2768
        %v2825 = vmul.f32 1.0, %v2824
        %v2826 = vrcp.pop %v2769
        %v2827 = vmul.f32 1.0, %v2826
        %v2828 = vrcp.pop %v2770
        %v2829 = vmul.f32 1.0, %v2828
        %v2830 = vrcp.pop %v2771
        %v2831 = vmul.f32 1.0, %v2830
        %v2832 = vrcp.pop %v2772
        %v2833 = vmul.f32 1.0, %v2832
        %v2834 = vrcp.pop %v2773
        %v2835 = vmul.f32 1.0, %v2834
        %v2836 = vrcp.pop %v2774
        %v2837 = vmul.f32 1.0, %v2836
        %v2838 = vrcp.pop %v2775
        %v2839 = vmul.f32 1.0, %v2838
        %v2840 = vadd.f32 %v2777, %v1808
        %v2841 = vadd.f32 %v2779, %v1809
        %v2842 = vadd.f32 %v2781, %v1810
        %v2843 = vadd.f32 %v2783, %v1811
        %v2844 = vadd.f32 %v2785, %v1812
        %v2845 = vadd.f32 %v2787, %v1813
        %v2846 = vadd.f32 %v2789, %v1814
        %v2847 = vadd.f32 %v2791, %v1815
        %v2848 = vadd.f32 %v2793, %v1816
        %v2849 = vadd.f32 %v2795, %v1817
        %v2850 = vadd.f32 %v2797, %v1818
        %v2851 = vadd.f32 %v2799, %v1819
        %v2852 = vadd.f32 %v2801, %v1820
        %v2853 = vadd.f32 %v2803, %v1821
        %v2854 = vadd.f32 %v2805, %v1822
        %v2855 = vadd.f32 %v2807, %v1823
        %v2856 = vadd.f32 %v2809, %v1824
        %v2857 = vadd.f32 %v2811, %v1825
        %v2858 = vadd.f32 %v2813, %v1826
        %v2859 = vadd.f32 %v2815, %v1827
        %v2860 = vadd.f32 %v2817, %v1828
        %v2861 = vadd.f32 %v2819, %v1829
        %v2862 = vadd.f32 %v2821, %v1830
        %v2863 = vadd.f32 %v2823, %v1831
        %v2864 = vadd.f32 %v2825, %v1832
        %v2865 = vadd.f32 %v2827, %v1833
        %v2866 = vadd.f32 %v2829, %v1834
        %v2867 = vadd.f32 %v2831, %v1835
        %v2868 = vadd.f32 %v2833, %v1836
        %v2869 = vadd.f32 %v2835, %v1837
        %v2870 = vadd.f32 %v2837, %v1838
        %v2871 = vadd.f32 %v2839, %v1839
        %v2872 = vld [vmem:[%s5] sm:$0x1]
        %v2873 = vld [vmem:[#allocation2] sm:$0x1]
        %2875 = vset.pattern.permute.xlu0 0
        %2876 = vperm.xlu0 %2875, %v2873
        %v2877 = vpop.permute.xlu0 %2876
        %v2879 = vlaneseq
        %v2880 = vshrl.u32 %v2879, 7
        %v2881 = vsub.s32 0, %v2880
        %v2882 = vrot.slane %v2877, %v2881
        %v2884 = vsel %vm865, %v2872, 0
        %2886 = vmatprep.subr.mxu0 %v2841
        %2887 = vmatpush1.msra.mxu0 %v2840
        %2888 = vmatprep.subr.mxu0 %v2845
        %2889 = vmatpush1.msra.mxu0 %v2844
        %2890 = vmatprep.subr.mxu0 %v2849
        %2891 = vmatpush1.msra.mxu0 %v2848
        %2892 = vmatprep.subr.mxu0 %v2853
        %2893 = vmatpush1.msra.mxu0 %v2852
        %2894 = vmatprep.subr.mxu0 %v2857
        %2895 = vmatpush1.msra.mxu0 %v2856
        %2896 = vmatprep.subr.mxu0 %v2861
        %2897 = vmatpush1.msra.mxu0 %v2860
        %2898 = vmatprep.subr.mxu0 %v2865
        %2899 = vmatpush1.msra.mxu0 %v2864
        %2900 = vmatprep.subr.mxu0 %v2869
        %2901 = vmatpush1.msra.mxu0 %v2868
        %2902 = vmatprep.subr.mxu0 0.0
        %2903 = vmatpush1.msra.mxu0 0.0
        %2904 = vmatprep.subr.mxu0 0.0
        %2905 = vmatpush1.msra.mxu0 0.0
        %2906 = vmatprep.subr.mxu0 0.0
        %2907 = vmatpush1.msra.mxu0 0.0
        %2908 = vmatprep.subr.mxu0 0.0
        %2909 = vmatpush1.msra.mxu0 0.0
        %2910 = vmatprep.subr.mxu0 0.0
        %2911 = vmatpush1.msra.mxu0 0.0
        %2912 = vmatprep.subr.mxu0 0.0
        %2913 = vmatpush1.msra.mxu0 0.0
        %2914 = vmatprep.subr.mxu0 0.0
        %2915 = vmatpush1.msra.mxu0 0.0
        %2916 = vmatprep.subr.mxu0 0.0
        %2917 = vmatpush1.msra.mxu0 0.0
        %2918 = vmatprep.subr.mxu0 0.0
        %2919 = vmatpush1.msra.mxu0 0.0
        %2920 = vmatprep.subr.mxu0 0.0
        %2921 = vmatpush1.msra.mxu0 0.0
        %2922 = vmatprep.subr.mxu0 0.0
        %2923 = vmatpush1.msra.mxu0 0.0
        %2924 = vmatprep.subr.mxu0 0.0
        %2925 = vmatpush1.msra.mxu0 0.0
        %2926 = vmatprep.subr.mxu0 0.0
        %2927 = vmatpush1.msra.mxu0 0.0
        %2928 = vmatprep.subr.mxu0 0.0
        %2929 = vmatpush1.msra.mxu0 0.0
        %2930 = vmatprep.subr.mxu0 0.0
        %2931 = vmatpush1.msra.mxu0 0.0
        %2932 = vmatprep.subr.mxu0 0.0
        %2933 = vmatpush1.msra.mxu0 0.0
        %2934 = vmatprep.subr.mxu0 0.0
        %2935 = vmatpush1.msra.mxu0 0.0
        %2936 = vmatprep.subr.mxu0 0.0
        %2937 = vmatpush1.msra.mxu0 0.0
        %2938 = vmatprep.subr.mxu0 0.0
        %2939 = vmatpush1.msra.mxu0 0.0
        %2940 = vmatprep.subr.mxu0 0.0
        %2941 = vmatpush1.msra.mxu0 0.0
        %2942 = vmatprep.subr.mxu0 0.0
        %2943 = vmatpush1.msra.mxu0 0.0
        %2944 = vmatprep.subr.mxu0 0.0
        %2945 = vmatpush1.msra.mxu0 0.0
        %2946 = vmatprep.subr.mxu0 0.0
        %2947 = vmatpush1.msra.mxu0 0.0
        %2948 = vmatprep.subr.mxu0 0.0
        %2949 = vmatpush1.msra.mxu0 0.0
        %2950 = vmatprep.mubr.f32.mxu0 0.0
        %2951 = vmatmul.mubr.f32.gmra.mrb[0].mxu0 %v2884
        %v2952 = vpop.f32.mrb[0].mxu0
        %v2953 = vadd.f32 %v2882, %v2952
        %v2954 = vpop.f32.mrb[0].mxu0
        %v2955 = vadd.f32 %v2882, %v2954
        %2956 = vdwg.mxu0
        %2957 = vmatprep.subr.mxu0 %v2843
        %2958 = vmatpush1.msra.mxu0 %v2842
        %2959 = vmatprep.subr.mxu0 %v2847
        %2960 = vmatpush1.msra.mxu0 %v2846
        %2961 = vmatprep.subr.mxu0 %v2851
        %2962 = vmatpush1.msra.mxu0 %v2850
        %2963 = vmatprep.subr.mxu0 %v2855
        %2964 = vmatpush1.msra.mxu0 %v2854
        %2965 = vmatprep.subr.mxu0 %v2859
        %2966 = vmatpush1.msra.mxu0 %v2858
        %2967 = vmatprep.subr.mxu0 %v2863
        %2968 = vmatpush1.msra.mxu0 %v2862
        %2969 = vmatprep.subr.mxu0 %v2867
        %2970 = vmatpush1.msra.mxu0 %v2866
        %2971 = vmatprep.subr.mxu0 %v2871
        %2972 = vmatpush1.msra.mxu0 %v2870
        %2973 = vmatprep.subr.mxu0 0.0
        %2974 = vmatpush1.msra.mxu0 0.0
        %2975 = vmatprep.subr.mxu0 0.0
        %2976 = vmatpush1.msra.mxu0 0.0
        %2977 = vmatprep.subr.mxu0 0.0
        %2978 = vmatpush1.msra.mxu0 0.0
        %2979 = vmatprep.subr.mxu0 0.0
        %2980 = vmatpush1.msra.mxu0 0.0
        %2981 = vmatprep.subr.mxu0 0.0
        %2982 = vmatpush1.msra.mxu0 0.0
        %2983 = vmatprep.subr.mxu0 0.0
        %2984 = vmatpush1.msra.mxu0 0.0
        %2985 = vmatprep.subr.mxu0 0.0
        %2986 = vmatpush1.msra.mxu0 0.0
        %2987 = vmatprep.subr.mxu0 0.0
        %2988 = vmatpush1.msra.mxu0 0.0
        %2989 = vmatprep.subr.mxu0 0.0
        %2990 = vmatpush1.msra.mxu0 0.0
        %2991 = vmatprep.subr.mxu0 0.0
        %2992 = vmatpush1.msra.mxu0 0.0
        %2993 = vmatprep.subr.mxu0 0.0
        %2994 = vmatpush1.msra.mxu0 0.0
        %2995 = vmatprep.subr.mxu0 0.0
        %2996 = vmatpush1.msra.mxu0 0.0
        %2997 = vmatprep.subr.mxu0 0.0
        %2998 = vmatpush1.msra.mxu0 0.0
        %2999 = vmatprep.subr.mxu0 0.0
        %3000 = vmatpush1.msra.mxu0 0.0
        %3001 = vmatprep.subr.mxu0 0.0
        %3002 = vmatpush1.msra.mxu0 0.0
        %3003 = vmatprep.subr.mxu0 0.0
        %3004 = vmatpush1.msra.mxu0 0.0
        %3005 = vmatprep.subr.mxu0 0.0
        %3006 = vmatpush1.msra.mxu0 0.0
        %3007 = vmatprep.subr.mxu0 0.0
        %3008 = vmatpush1.msra.mxu0 0.0
        %3009 = vmatprep.subr.mxu0 0.0
        %3010 = vmatpush1.msra.mxu0 0.0
        %3011 = vmatprep.subr.mxu0 0.0
        %3012 = vmatpush1.msra.mxu0 0.0
        %3013 = vmatprep.subr.mxu0 0.0
        %3014 = vmatpush1.msra.mxu0 0.0
        %3015 = vmatprep.subr.mxu0 0.0
        %3016 = vmatpush1.msra.mxu0 0.0
        %3017 = vmatprep.subr.mxu0 0.0
        %3018 = vmatpush1.msra.mxu0 0.0
        %3019 = vmatprep.subr.mxu0 0.0
        %3020 = vmatpush1.msra.mxu0 0.0
        %3021 = vmatprep.mubr.f32.mxu0 0.0
        %3022 = vmatmul.mubr.f32.gmra.mrb[0].mxu0 %v2884
        %v3023 = vpop.f32.mrb[0].mxu0
        %v3024 = vadd.f32 %v2882, %v3023
        %v3025 = vpop.f32.mrb[0].mxu0
        %v3026 = vadd.f32 %v2882, %v3025
        %3027 = vdwg.mxu0
        %v3032 = vcombine.low %v2953, %v2955
        %v3033 = vcombine.low %v3024, %v3026
        %v3035 = vunpack.c.l.s4 1966171168
        %v3036 = vunpack.c.0.s8 %v3035
        %v3037 = vlaneseq
        %v3038 = vshrl.u32 %v3037, 7
        %v3039 = vsub.s32 %v3036, %v3038
        %v3040 = vrot.slane %v3032, %v3039
        %v3042 = vunpack.c.l.s4 1966171168
        %v3043 = vunpack.c.0.s8 %v3042
        %v3044 = vlaneseq
        %v3045 = vshrl.u32 %v3044, 7
        %v3046 = vsub.s32 %v3043, %v3045
        %v3047 = vrot.slane %v3033, %v3046
        %v3048 = vcombine.low %v3040, %v3047
        %v3050 = vunpack.c.l.s4 1966171168
        %v3051 = vunpack.c.0.s8 %v3050
        %v3052 = vlaneseq
        %v3053 = vshrl.u32 %v3052, 7
        %v3054 = vsub.s32 %v3051, %v3053
        %v3055 = vrot.slane %v3048, %v3054
        %v3057 = vlaneseq
        %vm3058 = vcmp.ge.s32.totalorder %v3057, 0
        %vm3059 = vcmp.lt.s32.totalorder %v3057, 512
        %vm3060 = vmand %vm3058, %vm3059
        %3061 = vst.msk [vmem:[%s274] sm:$0xf] %vm3060, %v3055
        %s3062 = sand.u32 %s183, 1
        %s3063 = scalar_lea.sflag [#allocation4], %s3062
        %s3064 = sand.u32 %s183, 1
        %s3065 = smul.addr %s3064, 4
        %s3066 = scalar_lea.vmem [#allocation3], %s3065
        // Predicated region
        $region49: #{tpu_custom_call.1} parent=47 // pred_check
          %p3067 = pneg %p193
        $region50: #{tpu_custom_call.1} parent=47 // pred_check_branch
          %3069 = sbr.rel (%p3067) target = $region52
        $region51: #{tpu_custom_call.1} parent=47 // pred_region
          %s3070 = smul.u32 4, %s23
          %s3072 = ssub.s32 64, 64
          %3073 = vsyncadd %s3063, %s3072
          %s3074 = smul.addr %s3070, 16
          %s3075 = scalar_lea.hbm %s7, %s3074
          %s3077 = sshll.u32 %s3066, 4
          %s3078 = int_to_ptr.vmem [resolvable:$true] %s3077
          %3080 = dma.vmem_to_hbm [thread:$0]  %s3078, 64, %s3075, %s3063
        $region52: #{tpu_custom_call.1} parent=47 // pred_fallthru
          _
      $region48: #{tpu_custom_call.1} parent=5 // pred_fallthru
        _
      %p3081 = scmp.le.s32.totalorder 2, %s18
      // Predicated region
      $region53: #{tpu_custom_call.1} parent=5 // pred_check
        %p3082 = pneg %p3081
      $region54: #{tpu_custom_call.1} parent=5 // pred_check_branch
        %3084 = sbr.rel (%p3082) target = $region56
      $region55: #{tpu_custom_call.1} parent=5 // pred_region
        %s3085 = ssub.s32 %s18, 2
        // Predicated region
        $region57: #{tpu_custom_call.1} parent=55 // pred_check
          %p3086 = pneg %p199
        $region58: #{tpu_custom_call.1} parent=55 // pred_check_branch
          %3088 = sbr.rel (%p3086) target = $region60
        $region59: #{tpu_custom_call.1} parent=55 // pred_region
          %s3089 = sand.u32 %s184, 1
          %s3090 = scalar_lea.sflag [#allocation4], %s3089
          %s3091 = sand.u32 %s184, 1
          %s3092 = smul.addr %s3091, 4
          %s3093 = scalar_lea.vmem [#allocation3], %s3092
          %3094 = dma.done %s3090, 64
        $region60: #{tpu_custom_call.1} parent=55 // pred_fallthru
          _
      $region56: #{tpu_custom_call.1} parent=5 // pred_fallthru
        _
    $region6: #{tpu_custom_call.1} parent=1 // loop_footer
      %s22 = sadd.s32 1, %s18
    $region7: #{tpu_custom_call.1} parent=1 // loop_footer_branch
      %17 = sbr.rel target = $region3
    $region8: #{tpu_custom_call.1} parent=1 // loop_exit
      _
    %3095 = vsyncpa [#allocation4], 1
    %s3096 = scalar_lea.sflag [#allocation4], 1
    %3097 = vsyncpa %s3096, 1

</llo_original>
